<compile_context>
chip_gen: v7x
topology: tpu7x:2x2x1
jax: 0.10.0
libtpu: 0.0.40
codegen_flags: <defaults>
</compile_context>

<pallas_src>
import functools

import jax
import jax.numpy as jnp
from jax.experimental import pallas as pl
from jax.experimental.pallas import tpu as pltpu


# ------------------------------ helpers ------------------------------------


def _round_up(x, m):
    return (x + m - 1) // m * m


def _cdiv(a, b):
    return -(-a // b)


def _pick_row_tile(m, cap=512, align=16):
    """Row tile: <= cap, multiple of `align`, and (when m allows) producing at
    least 2 row blocks so the v7x megacore has parallel work to shard."""
    mr = _round_up(max(m, 1), align)
    if mr < 2 * align:
        return mr
    g = max(2, _cdiv(mr, cap))
    return _round_up(_cdiv(mr, g), align)


def _pad2d(x, rows, cols):
    r, c = x.shape
    if r != rows or c != cols:
        x = jnp.pad(x, ((0, rows - r), (0, cols - c)))
    return x


# --------------------------- Pallas kernels --------------------------------


def _bn_relu_kernel(x_ref, ss_ref, o_ref):
    # x: (tm, Cf), ss: (2, Cf) = [scale; shift]. y = relu(x*scale + shift).
    ss = ss_ref[...]
    y = x_ref[...].astype(jnp.float32) * ss[0:1, :] + ss[1:2, :]
    o_ref[...] = jnp.maximum(y, 0.0).astype(o_ref.dtype)


def bn_relu(x_nhwc, scale, shift):
    """Fused inference BatchNorm + ReLU. (N,H,W,C) f32 -> (N,H,W,C) bf16.

    Folds rows into lanes when C divides 128 so stores are lane-dense.
    """
    N, H, W, C = x_nhwc.shape
    M = N * H * W
    x2 = x_nhwc.reshape(M, C).astype(jnp.float32)

    fold = 128 // C if (C < 128 and 128 % C == 0) else 1
    if fold > 1:
        Mpad = _round_up(M, fold)
        if Mpad != M:
            x2 = jnp.pad(x2, ((0, Mpad - M), (0, 0)))
        x2 = x2.reshape(Mpad // fold, C * fold)
    Mf, Cf = x2.shape

    scale_f = jnp.tile(scale.astype(jnp.float32), fold)
    shift_f = jnp.tile(shift.astype(jnp.float32), fold)
    ss = jnp.stack([scale_f, shift_f], axis=0)  # (2, Cf)

    tm = _pick_row_tile(Mf)
    Mp = _round_up(Mf, tm)
    if Mp != Mf:
        x2 = jnp.pad(x2, ((0, Mp - Mf), (0, 0)))

    out = pl.pallas_call(
        _bn_relu_kernel,
        out_shape=jax.ShapeDtypeStruct((Mp, Cf), jnp.bfloat16),
        grid=(Mp // tm,),
        in_specs=[
            pl.BlockSpec((tm, Cf), lambda i: (i, 0)),
            pl.BlockSpec((2, Cf), lambda i: (0, 0)),
        ],
        out_specs=pl.BlockSpec((tm, Cf), lambda i: (i, 0)),
        compiler_params=pltpu.CompilerParams(dimension_semantics=("parallel",)),
    )(x2, ss)

    out = out[:Mf]
    if fold > 1:
        out = out.reshape(Mf * fold, C)
    out = out[:M]
    return out.reshape(N, H, W, C)


def _conv_matmul_kernel(*refs, fuse_bn_relu, fuse_residual):
    # refs = (a, w, [scale_shift], [res], o). Full-K block: one dot per tile.
    a_ref, w_ref = refs[0], refs[1]
    idx = 2
    if fuse_bn_relu:
        ss_ref = refs[idx]
        idx += 1
    if fuse_residual:
        res_ref = refs[idx]
        idx += 1
    o_ref = refs[idx]

    acc = jnp.dot(a_ref[...], w_ref[...], preferred_element_type=jnp.float32)
    if fuse_bn_relu:
        ss = ss_ref[...]
        acc = jnp.maximum(acc * ss[0:1, :] + ss[1:2, :], 0.0)
    if fuse_residual:
        acc = acc + res_ref[...].astype(jnp.float32)
    o_ref[...] = acc.astype(o_ref.dtype)


def matmul_fused(a, w, *, scale=None, shift=None, residual=None,
                 out_dtype=jnp.float32):
    """(M,K) @ (K,Cout) with optional fused BN(scale,shift)+ReLU and residual.

    Inputs cast to bf16 (f32 accumulation). K is taken as a single full block
    (padded only to the next 128); M/Cout padded to lane/sublane-friendly
    tiles; padding sliced off before returning.
    """
    M, K = a.shape
    K2, Cout = w.shape
    assert K == K2
    fuse_bn_relu = scale is not None
    fuse_residual = residual is not None

    Kp = _round_up(K, 128)                    # full-K block, no K grid axis
    tn = 128 if Cout <= 128 else 256          # 256 helps v6e/v7x when Cout>128
    Np = _round_up(Cout, tn)
    tm = _pick_row_tile(M)
    Mp = _round_up(M, tm)

    a_p = _pad2d(a.astype(jnp.bfloat16), Mp, Kp)
    w_p = _pad2d(w.astype(jnp.bfloat16), Kp, Np)

    inputs = [a_p, w_p]
    in_specs = [
        # A depends only on i; with j as the inner grid axis it is fetched
        # once per i, while the (small) weight tile is re-streamed.
        pl.BlockSpec((tm, Kp), lambda i, j: (i, 0)),
        pl.BlockSpec((Kp, tn), lambda i, j: (0, j)),
    ]
    if fuse_bn_relu:
        ss = jnp.stack([scale.astype(jnp.float32),
                        shift.astype(jnp.float32)], axis=0)  # (2, Cout)
        inputs.append(_pad2d(ss, 2, Np))
        in_specs.append(pl.BlockSpec((2, tn), lambda i, j: (0, j)))
    if fuse_residual:
        inputs.append(_pad2d(residual.astype(jnp.bfloat16), Mp, Np))
        in_specs.append(pl.BlockSpec((tm, tn), lambda i, j: (i, j)))

    kernel = functools.partial(_conv_matmul_kernel,
                               fuse_bn_relu=fuse_bn_relu,
                               fuse_residual=fuse_residual)
    out = pl.pallas_call(
        kernel,
        out_shape=jax.ShapeDtypeStruct((Mp, Np), out_dtype),
        grid=(Mp // tm, Np // tn),
        in_specs=in_specs,
        out_specs=pl.BlockSpec((tm, tn), lambda i, j: (i, j)),
        compiler_params=pltpu.CompilerParams(
            dimension_semantics=("parallel", "parallel")),
    )(*inputs)
    return out[:M, :Cout]


# ------------------------------ JAX glue ------------------------------------


def extract_patches(x, k, stride, pad, dilation):
    """im2col with dilation. x: (N,H,W,C) -> (N, Ho*Wo, k*k*C), dtype preserved."""
    x = jnp.pad(x, ((0, 0), (pad, pad), (pad, pad), (0, 0)))
    N, Hp, Wp, C = x.shape
    eff = dilation * (k - 1) + 1
    Ho = (Hp - eff) // stride + 1
    Wo = (Wp - eff) // stride + 1
    cols = []
    for i in range(k):
        for j in range(k):
            di, dj = i * dilation, j * dilation
            cols.append(x[:, di:di + stride * Ho:stride,
                          dj:dj + stride * Wo:stride, :])
    p = jnp.stack(cols, axis=3)  # (N, Ho, Wo, k*k, C) -- (i*k+j, c) ordering
    return p.reshape(N, Ho * Wo, k * k * C), Ho, Wo


def conv2d_fused(x_nhwc, w_oihw, *, stride=1, padding=0, dilation=1,
                 bn_scale=None, bn_shift=None, residual=None,
                 out_dtype=jnp.float32):
    """Conv2d (bias=False, PyTorch semantics) + optional fused BN/ReLU/residual."""
    N = x_nhwc.shape[0]
    Cout, Cin, kh, kw = w_oihw.shape
    patches, Ho, Wo = extract_patches(x_nhwc, kh, stride, padding, dilation)
    # (Cout,Cin,kh,kw) -> (kh,kw,Cin,Cout) -> (kh*kw*Cin, Cout) to match patches.
    w_mat = jnp.transpose(w_oihw, (2, 3, 1, 0)).reshape(kh * kw * Cin, Cout)
    res2d = None
    if residual is not None:
        res2d = residual.reshape(N * Ho * Wo, Cout)
    out = matmul_fused(patches.reshape(N * Ho * Wo, kh * kw * Cin), w_mat,
                       scale=bn_scale, shift=bn_shift, residual=res2d,
                       out_dtype=out_dtype)
    return out.reshape(N, Ho, Wo, Cout)


def bn_inference_scale_shift(bn, eps=1e-5):
    inv = jax.lax.rsqrt(bn["var"] + eps)
    scale = bn["gamma"] * inv
    shift = bn["beta"] - bn["mean"] * scale
    return scale, shift


# --------------------------- parameters / model ------------------------------


def init_params(key, in_channels, mid_channels, out_channels, stride=1):
    """Deterministic init mimicking PyTorch defaults (conv uniform +/-1/sqrt(fan_in),
    non-trivial BN running stats / affine so the test exercises the BN math)."""
    same_shape = (in_channels == out_channels and stride == 1)

    def conv_w(k, cout, cin, kh, kw):
        fan_in = cin * kh * kw
        bound = 1.0 / (fan_in ** 0.5)
        return jax.random.uniform(k, (cout, cin, kh, kw), jnp.float32,
                                  minval=-bound, maxval=bound)

    def bn_p(k, c):
        k1, k2, k3, k4 = jax.random.split(k, 4)
        return {"gamma": jax.random.uniform(k1, (c,), jnp.float32, 0.5, 1.5),
                "beta": 0.1 * jax.random.normal(k2, (c,), jnp.float32),
                "mean": 0.1 * jax.random.normal(k3, (c,), jnp.float32),
                "var": jax.random.uniform(k4, (c,), jnp.float32, 0.5, 1.5)}

    keys = jax.random.split(key, 5)
    params = {
        "bn2a": bn_p(keys[0], in_channels),
        "w2a": conv_w(keys[1], mid_channels, in_channels, 3, 3),
        "bn2b1": bn_p(keys[2], mid_channels),
        "w2b1": conv_w(keys[3], out_channels, mid_channels, 3, 3),
    }
    if not same_shape:
        params["w_branch1"] = conv_w(keys[4], out_channels, in_channels, 1, 1)
    return params


def resblock_forward(params, x_nchw, *, stride=1, first_dilation=None,
                     dilation=1, get_x_bn_relu=False):
    """ResBlock.forward. x: (N,Cin,H,W) f32 -> (N,Cout,Ho,Wo) f32 [, x_bn_relu]."""
    if first_dilation is None:
        first_dilation = dilation
    same_shape = "w_branch1" not in params

    x = jnp.transpose(x_nchw, (0, 2, 3, 1)).astype(jnp.float32)  # NHWC

    # bn_branch2a + ReLU (fused Pallas kernel, bf16 activation out)
    s_a, b_a = bn_inference_scale_shift(params["bn2a"])
    h = bn_relu(x, s_a, b_a)                                     # x_bn_relu (bf16)

    # branch1: identity (same_shape, pre-BN input per reference module) or
    # 1x1 strided conv on the bn-relu output, produced directly as bf16 so it
    # streams cheaply into the residual epilogue.
    if same_shape:
        branch1 = x
    else:
        branch1 = conv2d_fused(h, params["w_branch1"], stride=stride,
                               out_dtype=jnp.bfloat16)

    # conv_branch2a  (+ fused bn_branch2b1 + ReLU in the matmul epilogue)
    s_b, b_b = bn_inference_scale_shift(params["bn2b1"])
    b2 = conv2d_fused(h, params["w2a"], stride=stride, padding=first_dilation,
                      dilation=first_dilation, bn_scale=s_b, bn_shift=b_b,
                      out_dtype=jnp.bfloat16)  # bf16 internal activation

    # conv_branch2b1 (+ fused residual add of branch1 in the epilogue)
    out = conv2d_fused(b2, params["w2b1"], stride=1, padding=dilation,
                       dilation=dilation, residual=branch1,
                       out_dtype=jnp.float32)

    out = jnp.transpose(out, (0, 3, 1, 2))                       # NCHW
    if get_x_bn_relu:
        return out, jnp.transpose(h, (0, 3, 1, 2)).astype(jnp.float32)
    return out


# --------------------------------- main -------------------------------------

if __name__ == "__main__":
    key = jax.random.PRNGKey(0)
    kp, kx = jax.random.split(key)

    in_channels, mid_channels, out_channels = 32, 64, 128
    stride, dilation = 2, 1
    N, H, W = 2, 16, 16

    params = init_params(kp, in_channels, mid_channels, out_channels,
                         stride=stride)
    x = jax.random.normal(kx, (N, in_channels, H, W), jnp.float32)

    fwd = jax.jit(functools.partial(resblock_forward, stride=stride,
                                    dilation=dilation, get_x_bn_relu=True))
    out, x_bn_relu = fwd(params, x)
    out = jax.block_until_ready(out)
    x_bn_relu = jax.block_until_ready(x_bn_relu)

    Ho = (H - 1) // stride + 1
    assert out.shape == (N, out_channels, Ho, Ho), out.shape
    assert x_bn_relu.shape == (N, in_channels, H, W), x_bn_relu.shape
    assert bool(jnp.all(jnp.isfinite(out)))
    assert bool(jnp.all(x_bn_relu >= 0))
    print("KERNEL_OK")
</pallas_src>

<mosaic_0001>
module attributes {stable_mosaic.version = 11 : i64} {
  func.func @_bn_relu_kernel(%arg0: i32, %arg1: memref<64x128xf32, #tpu.memory_space<vmem>>, %arg2: memref<2x128xf32, #tpu.memory_space<vmem>>, %arg3: memref<64x128xbf16, #tpu.memory_space<vmem>>) attributes {dimension_semantics = [#tpu.dimension_semantics<parallel>], iteration_bounds = array<i64: 2>, scalar_prefetch = 0 : i64, scratch_operands = 0 : i64, tpu.core_type = #tpu.core_type<tc>, window_params = [{transform_indices = @transform_0, window_bounds = array<i64: 64, 128>}, {pipeline_mode = #tpu.pipeline_mode<synchronous>, transform_indices = @transform_1, window_bounds = array<i64: 2, 128>}, {transform_indices = @transform_2, window_bounds = array<i64: 64, 128>}]} {
    %c0 = arith.constant 0 : index
    %c0_0 = arith.constant 0 : index
    %0 = vector.load %arg2[%c0, %c0_0] : memref<2x128xf32, #tpu.memory_space<vmem>>, vector<2x128xf32>
    %c0_1 = arith.constant 0 : index
    %c0_2 = arith.constant 0 : index
    %1 = vector.load %arg1[%c0_1, %c0_2] : memref<64x128xf32, #tpu.memory_space<vmem>>, vector<64x128xf32>
    %2 = vector.extract_strided_slice %0 {offsets = [0, 0], sizes = [1, 128], strides = [1, 1]} : vector<2x128xf32> to vector<1x128xf32>
    %3 = vector.broadcast %2 : vector<1x128xf32> to vector<64x128xf32>
    %4 = arith.mulf %1, %3 : vector<64x128xf32>
    %5 = vector.extract_strided_slice %0 {offsets = [1, 0], sizes = [1, 128], strides = [1, 1]} : vector<2x128xf32> to vector<1x128xf32>
    %6 = vector.broadcast %5 : vector<1x128xf32> to vector<64x128xf32>
    %7 = arith.addf %4, %6 : vector<64x128xf32>
    %cst = arith.constant 0.000000e+00 : f32
    %8 = vector.broadcast %cst : f32 to vector<64x128xf32>
    %9 = arith.maximumf %7, %8 : vector<64x128xf32>
    %10 = arith.truncf %9 : vector<64x128xf32> to vector<64x128xbf16>
    %c0_3 = arith.constant 0 : index
    %c0_4 = arith.constant 0 : index
    %11 = vector.load %arg3[%c0_3, %c0_4] : memref<64x128xbf16, #tpu.memory_space<vmem>>, vector<64x128xbf16>
    tpu.vector_store %arg3[%c0_3, %c0_4], %10 {strides = array<i32>} : memref<64x128xbf16, #tpu.memory_space<vmem>>, vector<64x128xbf16>,
    return
  }
  func.func @transform_0(%arg0: i32) -> (i32, i32) {
    %c0_i32 = arith.constant 0 : i32
    %c0_i32_0 = arith.constant 0 : i32
    return %arg0, %c0_i32 : i32, i32
  }
  func.func @transform_1(%arg0: i32) -> (i32, i32) {
    %c0_i32 = arith.constant 0 : i32
    %c0_i32_0 = arith.constant 0 : i32
    %c0_i32_1 = arith.constant 0 : i32
    return %c0_i32, %c0_i32_0 : i32, i32
  }
  func.func @transform_2(%arg0: i32) -> (i32, i32) {
    %c0_i32 = arith.constant 0 : i32
    %c0_i32_0 = arith.constant 0 : i32
    return %arg0, %c0_i32 : i32, i32
  }
}

module attributes {stable_mosaic.version = 11 : i64} {
  func.func @_conv_matmul_kernel(%arg0: i32, %arg1: i32, %arg2: memref<64x384xbf16, #tpu.memory_space<vmem>>, %arg3: memref<384x128xbf16, #tpu.memory_space<vmem>>, %arg4: memref<2x128xf32, #tpu.memory_space<vmem>>, %arg5: memref<64x128xbf16, #tpu.memory_space<vmem>>) attributes {dimension_semantics = [#tpu.dimension_semantics<parallel>, #tpu.dimension_semantics<parallel>], iteration_bounds = array<i64: 2, 1>, scalar_prefetch = 0 : i64, scratch_operands = 0 : i64, tpu.core_type = #tpu.core_type<tc>, window_params = [{transform_indices = @transform_0, window_bounds = array<i64: 64, 384>}, {transform_indices = @transform_1, window_bounds = array<i64: 384, 128>}, {transform_indices = @transform_2, window_bounds = array<i64: 2, 128>}, {transform_indices = @transform_3, window_bounds = array<i64: 64, 128>}]} {
    %c0 = arith.constant 0 : index
    %c0_0 = arith.constant 0 : index
    %0 = vector.load %arg2[%c0, %c0_0] : memref<64x384xbf16, #tpu.memory_space<vmem>>, vector<64x384xbf16>
    %c0_1 = arith.constant 0 : index
    %c0_2 = arith.constant 0 : index
    %1 = vector.load %arg3[%c0_1, %c0_2] : memref<384x128xbf16, #tpu.memory_space<vmem>>, vector<384x128xbf16>
    %cst = arith.constant dense<0.000000e+00> : vector<64x128xf32>
    %2 = tpu.matmul %0, %1, %cst {dimension_numbers = #tpu.dot_dimension_numbers<[1], [0], [0], [1], [0, 0, 1, 1], [], []>} : vector<64x384xbf16>, vector<384x128xbf16>, vector<64x128xf32> -> vector<64x128xf32>
    %c0_3 = arith.constant 0 : index
    %c0_4 = arith.constant 0 : index
    %3 = vector.load %arg4[%c0_3, %c0_4] : memref<2x128xf32, #tpu.memory_space<vmem>>, vector<2x128xf32>
    %4 = vector.extract_strided_slice %3 {offsets = [0, 0], sizes = [1, 128], strides = [1, 1]} : vector<2x128xf32> to vector<1x128xf32>
    %5 = vector.broadcast %4 : vector<1x128xf32> to vector<64x128xf32>
    %6 = arith.mulf %2, %5 : vector<64x128xf32>
    %7 = vector.extract_strided_slice %3 {offsets = [1, 0], sizes = [1, 128], strides = [1, 1]} : vector<2x128xf32> to vector<1x128xf32>
    %8 = vector.broadcast %7 : vector<1x128xf32> to vector<64x128xf32>
    %9 = arith.addf %6, %8 : vector<64x128xf32>
    %cst_5 = arith.constant 0.000000e+00 : f32
    %10 = vector.broadcast %cst_5 : f32 to vector<64x128xf32>
    %11 = arith.maximumf %9, %10 : vector<64x128xf32>
    %12 = arith.truncf %11 : vector<64x128xf32> to vector<64x128xbf16>
    %c0_6 = arith.constant 0 : index
    %c0_7 = arith.constant 0 : index
    %13 = vector.load %arg5[%c0_6, %c0_7] : memref<64x128xbf16, #tpu.memory_space<vmem>>, vector<64x128xbf16>
    tpu.vector_store %arg5[%c0_6, %c0_7], %12 {strides = array<i32>} : memref<64x128xbf16, #tpu.memory_space<vmem>>, vector<64x128xbf16>,
    return
  }
  func.func @transform_0(%arg0: i32, %arg1: i32) -> (i32, i32) {
    %c0_i32 = arith.constant 0 : i32
    %c0_i32_0 = arith.constant 0 : i32
    return %arg0, %c0_i32 : i32, i32
  }
  func.func @transform_1(%arg0: i32, %arg1: i32) -> (i32, i32) {
    %c0_i32 = arith.constant 0 : i32
    %c0_i32_0 = arith.constant 0 : i32
    return %c0_i32, %arg1 : i32, i32
  }
  func.func @transform_2(%arg0: i32, %arg1: i32) -> (i32, i32) {
    %c0_i32 = arith.constant 0 : i32
    %c0_i32_0 = arith.constant 0 : i32
    return %c0_i32, %arg1 : i32, i32
  }
  func.func @transform_3(%arg0: i32, %arg1: i32) -> (i32, i32) {
    %c0_i32 = arith.constant 0 : i32
    return %arg0, %arg1 : i32, i32
  }
}

module attributes {stable_mosaic.version = 11 : i64} {
  func.func @_conv_matmul_kernel(%arg0: i32, %arg1: i32, %arg2: memref<64x128xbf16, #tpu.memory_space<vmem>>, %arg3: memref<128x128xbf16, #tpu.memory_space<vmem>>, %arg4: memref<64x128xbf16, #tpu.memory_space<vmem>>) attributes {dimension_semantics = [#tpu.dimension_semantics<parallel>, #tpu.dimension_semantics<parallel>], iteration_bounds = array<i64: 2, 1>, scalar_prefetch = 0 : i64, scratch_operands = 0 : i64, tpu.core_type = #tpu.core_type<tc>, window_params = [{transform_indices = @transform_0, window_bounds = array<i64: 64, 128>}, {transform_indices = @transform_1, window_bounds = array<i64: 128, 128>}, {transform_indices = @transform_2, window_bounds = array<i64: 64, 128>}]} {
    %c0 = arith.constant 0 : index
    %c0_0 = arith.constant 0 : index
    %0 = vector.load %arg2[%c0, %c0_0] : memref<64x128xbf16, #tpu.memory_space<vmem>>, vector<64x128xbf16>
    %c0_1 = arith.constant 0 : index
    %c0_2 = arith.constant 0 : index
    %1 = vector.load %arg3[%c0_1, %c0_2] : memref<128x128xbf16, #tpu.memory_space<vmem>>, vector<128x128xbf16>
    %cst = arith.constant dense<0.000000e+00> : vector<64x128xf32>
    %2 = tpu.matmul %0, %1, %cst {dimension_numbers = #tpu.dot_dimension_numbers<[1], [0], [0], [1], [0, 0, 1, 1], [], []>} : vector<64x128xbf16>, vector<128x128xbf16>, vector<64x128xf32> -> vector<64x128xf32>
    %3 = arith.truncf %2 : vector<64x128xf32> to vector<64x128xbf16>
    %c0_3 = arith.constant 0 : index
    %c0_4 = arith.constant 0 : index
    %4 = vector.load %arg4[%c0_3, %c0_4] : memref<64x128xbf16, #tpu.memory_space<vmem>>, vector<64x128xbf16>
    tpu.vector_store %arg4[%c0_3, %c0_4], %3 {strides = array<i32>} : memref<64x128xbf16, #tpu.memory_space<vmem>>, vector<64x128xbf16>,
    return
  }
  func.func @transform_0(%arg0: i32, %arg1: i32) -> (i32, i32) {
    %c0_i32 = arith.constant 0 : i32
    %c0_i32_0 = arith.constant 0 : i32
    return %arg0, %c0_i32 : i32, i32
  }
  func.func @transform_1(%arg0: i32, %arg1: i32) -> (i32, i32) {
    %c0_i32 = arith.constant 0 : i32
    %c0_i32_0 = arith.constant 0 : i32
    return %c0_i32, %arg1 : i32, i32
  }
  func.func @transform_2(%arg0: i32, %arg1: i32) -> (i32, i32) {
    %c0_i32 = arith.constant 0 : i32
    return %arg0, %arg1 : i32, i32
  }
}

module attributes {stable_mosaic.version = 11 : i64} {
  func.func @_conv_matmul_kernel(%arg0: i32, %arg1: i32, %arg2: memref<64x640xbf16, #tpu.memory_space<vmem>>, %arg3: memref<640x128xbf16, #tpu.memory_space<vmem>>, %arg4: memref<64x128xbf16, #tpu.memory_space<vmem>>, %arg5: memref<64x128xf32, #tpu.memory_space<vmem>>) attributes {dimension_semantics = [#tpu.dimension_semantics<parallel>, #tpu.dimension_semantics<parallel>], iteration_bounds = array<i64: 2, 1>, scalar_prefetch = 0 : i64, scratch_operands = 0 : i64, tpu.core_type = #tpu.core_type<tc>, window_params = [{transform_indices = @transform_0, window_bounds = array<i64: 64, 640>}, {transform_indices = @transform_1, window_bounds = array<i64: 640, 128>}, {transform_indices = @transform_2, window_bounds = array<i64: 64, 128>}, {transform_indices = @transform_3, window_bounds = array<i64: 64, 128>}]} {
    %c0 = arith.constant 0 : index
    %c0_0 = arith.constant 0 : index
    %0 = vector.load %arg2[%c0, %c0_0] : memref<64x640xbf16, #tpu.memory_space<vmem>>, vector<64x640xbf16>
    %c0_1 = arith.constant 0 : index
    %c0_2 = arith.constant 0 : index
    %1 = vector.load %arg3[%c0_1, %c0_2] : memref<640x128xbf16, #tpu.memory_space<vmem>>, vector<640x128xbf16>
    %cst = arith.constant dense<0.000000e+00> : vector<64x128xf32>
    %2 = tpu.matmul %0, %1, %cst {dimension_numbers = #tpu.dot_dimension_numbers<[1], [0], [0], [1], [0, 0, 1, 1], [], []>} : vector<64x640xbf16>, vector<640x128xbf16>, vector<64x128xf32> -> vector<64x128xf32>
    %c0_3 = arith.constant 0 : index
    %c0_4 = arith.constant 0 : index
    %3 = vector.load %arg4[%c0_3, %c0_4] : memref<64x128xbf16, #tpu.memory_space<vmem>>, vector<64x128xbf16>
    %4 = arith.extf %3 : vector<64x128xbf16> to vector<64x128xf32>
    %5 = arith.addf %2, %4 : vector<64x128xf32>
    %c0_5 = arith.constant 0 : index
    %c0_6 = arith.constant 0 : index
    %6 = vector.load %arg5[%c0_5, %c0_6] : memref<64x128xf32, #tpu.memory_space<vmem>>, vector<64x128xf32>
    tpu.vector_store %arg5[%c0_5, %c0_6], %5 {strides = array<i32>} : memref<64x128xf32, #tpu.memory_space<vmem>>, vector<64x128xf32>,
    return
  }
  func.func @transform_0(%arg0: i32, %arg1: i32) -> (i32, i32) {
    %c0_i32 = arith.constant 0 : i32
    %c0_i32_0 = arith.constant 0 : i32
    return %arg0, %c0_i32 : i32, i32
  }
  func.func @transform_1(%arg0: i32, %arg1: i32) -> (i32, i32) {
    %c0_i32 = arith.constant 0 : i32
    %c0_i32_0 = arith.constant 0 : i32
    return %c0_i32, %arg1 : i32, i32
  }
  func.func @transform_2(%arg0: i32, %arg1: i32) -> (i32, i32) {
    %c0_i32 = arith.constant 0 : i32
    return %arg0, %arg1 : i32, i32
  }
  func.func @transform_3(%arg0: i32, %arg1: i32) -> (i32, i32) {
    %c0_i32 = arith.constant 0 : i32
    return %arg0, %arg1 : i32, i32
  }
}

</mosaic_0001>

<llo_original>
// kernel: tile.13
$region0: #{tile.13}
  #allocation0 [shape = 's32[1]{0}', space=sflag, size = 0x4, scoped, tag = 'scoped memory for tile.13']
  %s0 = inlined_call_operand.vmem [shape: f32[32], index: 0, kind: input, shape index: {}]
  %s1 = inlined_call_operand.vmem [shape: f32[4,32], index: 1, kind: output, shape index: {}]
  // Predicated region
  $region2: #{tile.13} parent=0 // pred_check
    _
  $region3: #{tile.13} parent=0 // pred_check_branch
    %3 = sbr.rel (0) target = $region5
  $region4: #{tile.13} parent=0 // pred_region
    _
  $region5: #{tile.13} parent=0 // pred_fallthru
    _
  %v4 = vld [vmem:[%s0] ss:$0 sm:$0xff]
  %5 = vst [vmem:[%s1] sm:$0xf] %v4

// kernel: tile.18
$region0: #{tile.18}
  %s0 = inlined_call_operand.vmem [shape: f32[4,32], index: 0, kind: input, shape index: {}]
  %s1 = inlined_call_operand.vmem [shape: f32[1,128], index: 1, kind: output, shape index: {}]
  $region1: #{tile.18} parent=0
    #allocation0 [shape = 'u8[4096]{0}', space=vmem, size = 0x1000, scoped, tag = 'scoped mem for output reshape']
    #allocation1 [shape = 'u8[4096]{0}', space=vmem, size = 0x1000, scoped, tag = 'scoped mem for input reshape']
    %s3 = sshllo.u32 0, 4
    %v4 = vld [vmem:[%s0] sm:%s3]
    %5 = vst [vmem:[#allocation1] sm:%s3] %v4
    %v6 = vld [vmem:[#allocation1] sm:$0x1]
    %vm7 = vcmask 261120
    %8 = vst.msk [vmem:[#allocation0] sm:$0x1] %vm7, %v6
    %s9 = scalar_lea.vmem [#allocation1], 3
    %v10 = vld [vmem:[%s9] sm:$0x1]
    %11 = vrot.lane.b32.xlu0 %v10, 96
    %v12 = vpop.permute.xlu0 %11
    %vm13 = vcmask 1048320
    %14 = vst.msk [vmem:[#allocation0] sm:$0x1] %vm13, %v12
    %s15 = scalar_lea.vmem [#allocation1], 2
    %v16 = vld [vmem:[%s15] sm:$0x1]
    %17 = vrot.lane.b32.xlu0 %v16, 64
    %v18 = vpop.permute.xlu0 %17
    %vm19 = vcmask 785920
    %20 = vst.msk [vmem:[#allocation0] sm:$0x1] %vm19, %v18
    %s21 = scalar_lea.vmem [#allocation1], 1
    %v22 = vld [vmem:[%s21] sm:$0x1]
    %23 = vrot.lane.b32.xlu0 %v22, 32
    %v24 = vpop.permute.xlu0 %23
    %vm25 = vcmask 523520
    %26 = vst.msk [vmem:[#allocation0] sm:$0x1] %vm25, %v24
    %s28 = sshllo.u32 0, 1
    %v30 = vld [vmem:[#allocation0] sm:%s28]
    %s31 = sshllo.u32 0, 1
    %32 = vst [vmem:[%s1] sm:%s31] %v30

// kernel: resblock_forward.4
$region0: #{resblock_forward.4}
  #allocation0 [shape = 'u32[]', space=smem, size = 0x4, offset = 0x4, fixed_abs, tag = 'smem constant byte address 0x4 - core index']
  #allocation1 [shape = 'u32[144,128]{1,0:T(1,128)}', space=vmem, size = 0x12000, scoped, tag = 'internal scratch']
  %s0 = inlined_call_operand.vmem [shape: f32[128,128], index: 0, kind: input, shape index: {}]
  %s1 = inlined_call_operand.vmem [shape: f32[2,128], index: 1, kind: input, shape index: {}]
  %s2 = inlined_call_operand.vmem [shape: bf16[128,128], index: 2, kind: output, shape index: {}]
  %s3 = sld [smem:[#allocation0]]
  $region41: #{resblock_forward.4} parent=0
    _
  %s5 = ssub.s32 1, %s3
  %s6 = scalar_select 0, %s5, %s3
  loop: start=0, step=1, limit=4
  $region2: #{resblock_forward.4} parent=0 // loop_pre_header
    _
  $region3: #{resblock_forward.4} parent=0 // loop_header
    %s8 = sphi 0, %s12
    %p9 = scmp.ge.s32.totalorder %s8, 4
    %s18 = sphi 0, %s20
    %s21 = sphi 0, %s18
    %s22 = sphi 0, %s21
    %s38 = sphi 0, %s22
    %s42 = sphi 0, %s42
    %s44 = sphi 0, %s42
    %s45 = sphi 0, %s44
    %s59 = sphi 0, %s45
    %s65 = sphi 0, %s67
    %s68 = sphi 0, %s65
    %s69 = sphi 0, %s68
    %s85 = sphi 0, %s69
  $region4: #{resblock_forward.4} parent=0 // loop_header_branch
    %11 = sbr.rel (%p9) target = $region8
  $region5: #{resblock_forward.4} parent=0 // loop_body
    %s13 = ssub.s32 %s8, 1
    %s14 = ssub.s32 %s8, 2
    %s15 = sadd.s32 %s8, 1
    %s16 = ssub.s32 %s8, %s15
    %p17 = scmp.eq.s32.totalorder %s16, 0
    %s19 = sadd.s32 %s18, 1
    %s20 = scalar_select %p17, %s18, %s19
    %p23 = pneg %p17
    %p24 = scmp.eq.s32.totalorder %s8, 1
    %p25 = por %p23, %p24
    %p26 = scmp.ne.s32.totalorder %s18, %s21
    %p27 = scmp.eq.s32.totalorder %s8, 0
    %p28 = por %p26, %p27
    %p29 = scmp.ne.s32.totalorder %s18, %s21
    %p30 = scmp.eq.s32.totalorder %s13, 1
    %p31 = por %p29, %p30
    %p32 = scmp.ne.s32.totalorder %s21, %s22
    %p33 = scmp.eq.s32.totalorder %s13, 0
    %p34 = por %p32, %p33
    %p35 = scmp.ne.s32.totalorder %s21, %s22
    %p36 = scmp.eq.s32.totalorder %s14, 1
    %p37 = por %p35, %p36
    %p39 = scmp.ne.s32.totalorder %s22, %s38
    %p40 = scmp.eq.s32.totalorder %s14, 0
    %p41 = por %p39, %p40
    %s43 = sadd.s32 %s42, 1
    %p46 = scmp.eq.s32.totalorder %s8, 1
    %p47 = scmp.ne.s32.totalorder %s42, %s44
    %p48 = scmp.eq.s32.totalorder %s8, 0
    %p49 = por %p47, %p48
    %p50 = scmp.ne.s32.totalorder %s42, %s44
    %p51 = scmp.eq.s32.totalorder %s13, 1
    %p52 = por %p50, %p51
    %p53 = scmp.ne.s32.totalorder %s44, %s45
    %p54 = scmp.eq.s32.totalorder %s13, 0
    %p55 = por %p53, %p54
    %p56 = scmp.ne.s32.totalorder %s44, %s45
    %p57 = scmp.eq.s32.totalorder %s14, 1
    %p58 = por %p56, %p57
    %p60 = scmp.ne.s32.totalorder %s45, %s59
    %p61 = scmp.eq.s32.totalorder %s14, 0
    %p62 = por %p60, %p61
    %s63 = ssub.s32 %s8, %s15
    %p64 = scmp.eq.s32.totalorder %s63, 0
    %s66 = sadd.s32 %s65, 1
    %s67 = scalar_select %p64, %s65, %s66
    %p70 = pneg %p64
    %p71 = scmp.eq.s32.totalorder %s8, 1
    %p72 = por %p70, %p71
    %p73 = scmp.ne.s32.totalorder %s65, %s68
    %p74 = scmp.eq.s32.totalorder %s8, 0
    %p75 = por %p73, %p74
    %p76 = scmp.ne.s32.totalorder %s65, %s68
    %p77 = scmp.eq.s32.totalorder %s13, 1
    %p78 = por %p76, %p77
    %p79 = scmp.ne.s32.totalorder %s68, %s69
    %p80 = scmp.eq.s32.totalorder %s13, 0
    %p81 = por %p79, %p80
    %p82 = scmp.ne.s32.totalorder %s68, %s69
    %p83 = scmp.eq.s32.totalorder %s14, 1
    %p84 = por %p82, %p83
    %p86 = scmp.ne.s32.totalorder %s69, %s85
    %p87 = scmp.eq.s32.totalorder %s14, 0
    %p88 = por %p86, %p87
    %p89 = scmp.le.s32.totalorder 1, %s8
    %p90 = scmp.lt.s32.totalorder %s8, 3
    %p91 = pnand %p89, %p90
    %p92 = pneg %p91
    // Predicated region
    $region9: #{resblock_forward.4} parent=5 // pred_check
      _
    $region10: #{resblock_forward.4} parent=5 // pred_check_branch
      %94 = sbr.rel (%p91) target = $region12
    $region11: #{resblock_forward.4} parent=5 // pred_region
      %s95 = ssub.s32 %s8, 1
      // Predicated region
      $region13: #{resblock_forward.4} parent=11 // pred_check
        %p96 = pneg %p55
      $region14: #{resblock_forward.4} parent=11 // pred_check_branch
        %98 = sbr.rel (%p96) target = $region16
      $region15: #{resblock_forward.4} parent=11 // pred_region
        _
      $region16: #{resblock_forward.4} parent=11 // pred_fallthru
        _
    $region12: #{resblock_forward.4} parent=5 // pred_fallthru
      _
    %p99 = scmp.lt.s32.totalorder %s8, 2
    // Predicated region
    $region17: #{resblock_forward.4} parent=5 // pred_check
      %p100 = pneg %p99
    $region18: #{resblock_forward.4} parent=5 // pred_check_branch
      %102 = sbr.rel (%p100) target = $region20
    $region19: #{resblock_forward.4} parent=5 // pred_region
      // Predicated region
      $region21: #{resblock_forward.4} parent=19 // pred_check
        %p103 = pneg %p28
      $region22: #{resblock_forward.4} parent=19 // pred_check_branch
        %105 = sbr.rel (%p103) target = $region24
      $region23: #{resblock_forward.4} parent=19 // pred_region
        %s106 = smul.u32 8, %s8
        %p107 = scmp.lt.s32.totalorder %s106, 15
        %s108 = scalar_select %p107, %s106, 15
        %s109 = smul.addr %s108, 8
        %s110 = scalar_lea.vmem %s0, %s109
        %s111 = smul.u32 8, %s8
      $region24: #{resblock_forward.4} parent=19 // pred_fallthru
        _
    $region20: #{resblock_forward.4} parent=5 // pred_fallthru
      _
    %p112 = scmp.le.s32.totalorder 1, %s8
    %p113 = scmp.lt.s32.totalorder %s8, 3
    %p114 = pnand %p112, %p113
    %p115 = pneg %p114
    // Predicated region
    $region25: #{resblock_forward.4} parent=5 // pred_check
      _
    $region26: #{resblock_forward.4} parent=5 // pred_check_branch
      %117 = sbr.rel (%p114) target = $region28
    $region27: #{resblock_forward.4} parent=5 // pred_region
      %s118 = ssub.s32 %s8, 1
      %s119 = smul.u32 8, %s13
      %p120 = scmp.lt.s32.totalorder %s119, 15
      %s121 = scalar_select %p120, %s119, 15
      %s122 = smul.addr %s121, 8
      %s123 = scalar_lea.vmem %s0, %s122
      %p124 = pneg %p34
      %p125 = pneg %p31
      %p126 = pneg %p55
      %p127 = pneg %p52
      %p128 = pneg %p81
      %p129 = pneg %p78
      %s130 = smul.u32 8, %s13
      %p131 = scmp.lt.s32.totalorder %s130, 15
      %s132 = scalar_select %p131, %s130, 15
      %s133 = smul.addr %s132, 4
      %s134 = scalar_lea.vmem %s2, %s133
      %s135 = smul.u32 8, %s13
      %p136 = scmp.lt.s32.totalorder %s135, 15
      %s137 = scalar_select %p136, %s135, 15
      %s138 = smul.addr %s137, 8
      %s139 = scalar_lea.vmem %s0, %s138
      %s140 = smul.u32 8, %s13
      %s141 = smul.u32 8, %s13
      %p142 = scmp.lt.s32.totalorder %s141, 15
      %s143 = scalar_select %p142, %s141, 15
      %s144 = smul.addr %s143, 4
      %s145 = scalar_lea.vmem %s2, %s144
      %s146 = smul.u32 8, %s13
      %v147 = vld [vmem:[%s1] sm:$0x3]
      %v148 = vld [vmem:[%s139] sm:$0xff]
      %v149 = vld [vmem:[%s139 + $0x8] sm:$0xff]
      %v150 = vld [vmem:[%s139 + $0x10] sm:$0xff]
      %v151 = vld [vmem:[%s139 + $0x18] sm:$0xff]
      %v152 = vld [vmem:[%s139 + $0x20] sm:$0xff]
      %v153 = vld [vmem:[%s139 + $0x28] sm:$0xff]
      %v154 = vld [vmem:[%s139 + $0x30] sm:$0xff]
      %v155 = vld [vmem:[%s139 + $0x38] sm:$0xff]
      %v156 = vlaneseq
      %v157 = vshrl.u32 %v156, 7
      %v158 = vsub.s32 0, %v157
      %v159 = vrot.slane %v147, %v158
      %v160 = vmul.f32 %v148, %v159
      %v161 = vmul.f32 %v149, %v159
      %v162 = vmul.f32 %v150, %v159
      %v163 = vmul.f32 %v151, %v159
      %v164 = vmul.f32 %v152, %v159
      %v165 = vmul.f32 %v153, %v159
      %v166 = vmul.f32 %v154, %v159
      %v167 = vmul.f32 %v155, %v159
      %v168 = vlaneseq
      %v169 = vshrl.u32 %v168, 7
      %v170 = vsub.s32 1, %v169
      %v171 = vrot.slane %v147, %v170
      %v172 = vadd.f32 %v160, %v171
      %v173 = vadd.f32 %v161, %v171
      %v174 = vadd.f32 %v162, %v171
      %v175 = vadd.f32 %v163, %v171
      %v176 = vadd.f32 %v164, %v171
      %v177 = vadd.f32 %v165, %v171
      %v178 = vadd.f32 %v166, %v171
      %v179 = vadd.f32 %v167, %v171
      %v180 = vmax.f32 %v172, 0.0
      %v181 = vmax.f32 %v173, 0.0
      %v182 = vmax.f32 %v174, 0.0
      %v183 = vmax.f32 %v175, 0.0
      %v184 = vmax.f32 %v176, 0.0
      %v185 = vmax.f32 %v177, 0.0
      %v186 = vmax.f32 %v178, 0.0
      %v187 = vmax.f32 %v179, 0.0
      %v188 = vpack.c.bf16 %v181, %v180
      %v189 = vpack.c.bf16 %v183, %v182
      %v190 = vpack.c.bf16 %v185, %v184
      %v191 = vpack.c.bf16 %v187, %v186
      %v196 = vunpack.c.l.b16 %v188
      %v197 = vunpack.c.h.b16 %v188
      %v198 = vunpack.c.l.b16 %v189
      %v199 = vunpack.c.h.b16 %v189
      %v200 = vunpack.c.l.b16 %v190
      %v201 = vunpack.c.h.b16 %v190
      %v202 = vunpack.c.l.b16 %v191
      %v203 = vunpack.c.h.b16 %v191
      %v204 = vpack.c.b16 %v196, %v196
      %v205 = vpack.c.b16 %v197, %v197
      %v206 = vpack.c.b16 %v198, %v198
      %v207 = vpack.c.b16 %v199, %v199
      %v208 = vpack.c.b16 %v200, %v200
      %v209 = vpack.c.b16 %v201, %v201
      %v210 = vpack.c.b16 %v202, %v202
      %v211 = vpack.c.b16 %v203, %v203
      %220 = vst [vmem:[%s145] sm:$0xf] %v204
      %221 = vst [vmem:[%s145 + $0x4] sm:$0xf] %v205
      %222 = vst [vmem:[%s145 + $0x8] sm:$0xf] %v206
      %223 = vst [vmem:[%s145 + $0xc] sm:$0xf] %v207
      %224 = vst [vmem:[%s145 + $0x10] sm:$0xf] %v208
      %225 = vst [vmem:[%s145 + $0x14] sm:$0xf] %v209
      %226 = vst [vmem:[%s145 + $0x18] sm:$0xf] %v210
      %227 = vst [vmem:[%s145 + $0x1c] sm:$0xf] %v211
      %s228 = smul.u32 8, %s13
      %p229 = scmp.lt.s32.totalorder %s228, 15
      %s230 = scalar_select %p229, %s228, 15
      %s231 = smul.addr %s230, 4
      %s232 = scalar_lea.vmem %s2, %s231
      // Predicated region
      $region29: #{resblock_forward.4} parent=27 // pred_check
        %p233 = pneg %p78
      $region30: #{resblock_forward.4} parent=27 // pred_check_branch
        %235 = sbr.rel (%p233) target = $region32
      $region31: #{resblock_forward.4} parent=27 // pred_region
        %s236 = smul.u32 8, %s13
      $region32: #{resblock_forward.4} parent=27 // pred_fallthru
        _
    $region28: #{resblock_forward.4} parent=5 // pred_fallthru
      _
    %p237 = scmp.le.s32.totalorder 2, %s8
    // Predicated region
    $region33: #{resblock_forward.4} parent=5 // pred_check
      %p238 = pneg %p237
    $region34: #{resblock_forward.4} parent=5 // pred_check_branch
      %240 = sbr.rel (%p238) target = $region36
    $region35: #{resblock_forward.4} parent=5 // pred_region
      %s241 = ssub.s32 %s8, 2
      // Predicated region
      $region37: #{resblock_forward.4} parent=35 // pred_check
        %p242 = pneg %p84
      $region38: #{resblock_forward.4} parent=35 // pred_check_branch
        %244 = sbr.rel (%p242) target = $region40
      $region39: #{resblock_forward.4} parent=35 // pred_region
        %s245 = smul.u32 8, %s14
        %p246 = scmp.lt.s32.totalorder %s245, 15
        %s247 = scalar_select %p246, %s245, 15
        %s248 = smul.addr %s247, 4
        %s249 = scalar_lea.vmem %s2, %s248
      $region40: #{resblock_forward.4} parent=35 // pred_fallthru
        _
    $region36: #{resblock_forward.4} parent=5 // pred_fallthru
      _
  $region6: #{resblock_forward.4} parent=0 // loop_footer
    %s12 = sadd.s32 1, %s8
  $region7: #{resblock_forward.4} parent=0 // loop_footer_branch
    %7 = sbr.rel target = $region3
  $region8: #{resblock_forward.4} parent=0 // loop_exit
    _

// kernel: resblock_forward.6
$region0: #{resblock_forward.6}
  #allocation0 [shape = 'u32[]', space=smem, size = 0x4, offset = 0x4, fixed_abs, tag = 'smem constant byte address 0x4 - core index']
  #allocation1 [shape = 'u32[144,128]{1,0:T(1,128)}', space=vmem, size = 0x12000, scoped, tag = 'internal scratch']
  %s0 = inlined_call_operand.vmem [shape: bf16[128,384], index: 0, kind: input, shape index: {}]
  %s1 = inlined_call_operand.vmem [shape: bf16[384,128], index: 1, kind: input, shape index: {}]
  %s2 = inlined_call_operand.vmem [shape: f32[2,128], index: 2, kind: input, shape index: {}]
  %s3 = inlined_call_operand.vmem [shape: bf16[128,128], index: 3, kind: output, shape index: {}]
  %s4 = sld [smem:[#allocation0]]
  $region45: #{resblock_forward.6} parent=0
    _
  %s6 = ssub.s32 1, %s4
  %s7 = scalar_select 0, %s6, %s4
  loop: start=0, step=1, limit=4
  $region2: #{resblock_forward.6} parent=0 // loop_pre_header
    _
  $region3: #{resblock_forward.6} parent=0 // loop_header
    %s9 = sphi 0, %s13
    %p10 = scmp.ge.s32.totalorder %s9, 4
    %s16 = sphi 0, %s28
    %s17 = sphi 0, %s24
    %s18 = sphi 0, %s16
    %s19 = sphi 0, %s17
    %s20 = sphi 0, %s18
    %s21 = sphi 0, %s19
    %s31 = sphi 0, %s33
    %s34 = sphi 0, %s31
    %s35 = sphi 0, %s34
    %s51 = sphi 0, %s35
    %s57 = sphi 0, %s59
    %s60 = sphi 0, %s57
    %s61 = sphi 0, %s60
    %s77 = sphi 0, %s61
    %s83 = sphi 0, %s85
    %s86 = sphi 0, %s83
    %s87 = sphi 0, %s86
    %s103 = sphi 0, %s87
    %s111 = sphi 0, %s113
    %s114 = sphi 0, %s111
    %s115 = sphi 0, %s114
    %s131 = sphi 0, %s115
  $region4: #{resblock_forward.6} parent=0 // loop_header_branch
    %12 = sbr.rel (%p10) target = $region8
  $region5: #{resblock_forward.6} parent=0 // loop_body
    %s14 = ssub.s32 %s9, 1
    %s15 = ssub.s32 %s9, 2
    %s22 = sadd.s32 1, %s17
    %p23 = scmp.ge.s32.totalorder %s22, 1
    %s24 = scalar_select %p23, 0, %s22
    %s25 = sadd.s32 1, %s16
    %s26 = scalar_select %p23, %s25, %s16
    %p27 = scmp.ge.s32.totalorder %s26, 2
    %s28 = scalar_select %p27, 0, %s26
    %s29 = ssub.s32 %s16, %s28
    %p30 = scmp.eq.s32.totalorder %s29, 0
    %s32 = sadd.s32 %s31, 1
    %s33 = scalar_select %p30, %s31, %s32
    %p36 = pneg %p30
    %p37 = scmp.eq.s32.totalorder %s9, 1
    %p38 = por %p36, %p37
    %p39 = scmp.ne.s32.totalorder %s31, %s34
    %p40 = scmp.eq.s32.totalorder %s9, 0
    %p41 = por %p39, %p40
    %p42 = scmp.ne.s32.totalorder %s31, %s34
    %p43 = scmp.eq.s32.totalorder %s14, 1
    %p44 = por %p42, %p43
    %p45 = scmp.ne.s32.totalorder %s34, %s35
    %p46 = scmp.eq.s32.totalorder %s14, 0
    %p47 = por %p45, %p46
    %p48 = scmp.ne.s32.totalorder %s34, %s35
    %p49 = scmp.eq.s32.totalorder %s15, 1
    %p50 = por %p48, %p49
    %p52 = scmp.ne.s32.totalorder %s35, %s51
    %p53 = scmp.eq.s32.totalorder %s15, 0
    %p54 = por %p52, %p53
    %s55 = ssub.s32 %s17, %s24
    %p56 = scmp.eq.s32.totalorder %s55, 0
    %s58 = sadd.s32 %s57, 1
    %s59 = scalar_select %p56, %s57, %s58
    %p62 = pneg %p56
    %p63 = scmp.eq.s32.totalorder %s9, 1
    %p64 = por %p62, %p63
    %p65 = scmp.ne.s32.totalorder %s57, %s60
    %p66 = scmp.eq.s32.totalorder %s9, 0
    %p67 = por %p65, %p66
    %p68 = scmp.ne.s32.totalorder %s57, %s60
    %p69 = scmp.eq.s32.totalorder %s14, 1
    %p70 = por %p68, %p69
    %p71 = scmp.ne.s32.totalorder %s60, %s61
    %p72 = scmp.eq.s32.totalorder %s14, 0
    %p73 = por %p71, %p72
    %p74 = scmp.ne.s32.totalorder %s60, %s61
    %p75 = scmp.eq.s32.totalorder %s15, 1
    %p76 = por %p74, %p75
    %p78 = scmp.ne.s32.totalorder %s61, %s77
    %p79 = scmp.eq.s32.totalorder %s15, 0
    %p80 = por %p78, %p79
    %s81 = ssub.s32 %s17, %s24
    %p82 = scmp.eq.s32.totalorder %s81, 0
    %s84 = sadd.s32 %s83, 1
    %s85 = scalar_select %p82, %s83, %s84
    %p88 = pneg %p82
    %p89 = scmp.eq.s32.totalorder %s9, 1
    %p90 = por %p88, %p89
    %p91 = scmp.ne.s32.totalorder %s83, %s86
    %p92 = scmp.eq.s32.totalorder %s9, 0
    %p93 = por %p91, %p92
    %p94 = scmp.ne.s32.totalorder %s83, %s86
    %p95 = scmp.eq.s32.totalorder %s14, 1
    %p96 = por %p94, %p95
    %p97 = scmp.ne.s32.totalorder %s86, %s87
    %p98 = scmp.eq.s32.totalorder %s14, 0
    %p99 = por %p97, %p98
    %p100 = scmp.ne.s32.totalorder %s86, %s87
    %p101 = scmp.eq.s32.totalorder %s15, 1
    %p102 = por %p100, %p101
    %p104 = scmp.ne.s32.totalorder %s87, %s103
    %p105 = scmp.eq.s32.totalorder %s15, 0
    %p106 = por %p104, %p105
    %s107 = ssub.s32 %s16, %s28
    %s108 = ssub.s32 %s17, %s24
    %s109 = sor.u32 %s107, %s108
    %p110 = scmp.eq.s32.totalorder %s109, 0
    %s112 = sadd.s32 %s111, 1
    %s113 = scalar_select %p110, %s111, %s112
    %p116 = pneg %p110
    %p117 = scmp.eq.s32.totalorder %s9, 1
    %p118 = por %p116, %p117
    %p119 = scmp.ne.s32.totalorder %s111, %s114
    %p120 = scmp.eq.s32.totalorder %s9, 0
    %p121 = por %p119, %p120
    %p122 = scmp.ne.s32.totalorder %s111, %s114
    %p123 = scmp.eq.s32.totalorder %s14, 1
    %p124 = por %p122, %p123
    %p125 = scmp.ne.s32.totalorder %s114, %s115
    %p126 = scmp.eq.s32.totalorder %s14, 0
    %p127 = por %p125, %p126
    %p128 = scmp.ne.s32.totalorder %s114, %s115
    %p129 = scmp.eq.s32.totalorder %s15, 1
    %p130 = por %p128, %p129
    %p132 = scmp.ne.s32.totalorder %s115, %s131
    %p133 = scmp.eq.s32.totalorder %s15, 0
    %p134 = por %p132, %p133
    %p135 = scmp.le.s32.totalorder 1, %s9
    %p136 = scmp.lt.s32.totalorder %s9, 3
    %p137 = pnand %p135, %p136
    %p138 = pneg %p137
    // Predicated region
    $region9: #{resblock_forward.6} parent=5 // pred_check
      _
    $region10: #{resblock_forward.6} parent=5 // pred_check_branch
      %140 = sbr.rel (%p137) target = $region12
    $region11: #{resblock_forward.6} parent=5 // pred_region
      %s141 = ssub.s32 %s9, 1
      // Predicated region
      $region13: #{resblock_forward.6} parent=11 // pred_check
        %p142 = pneg %p73
      $region14: #{resblock_forward.6} parent=11 // pred_check_branch
        %144 = sbr.rel (%p142) target = $region16
      $region15: #{resblock_forward.6} parent=11 // pred_region
        %p145 = scmp.lt.s32.totalorder %s19, 0
        %s146 = scalar_select %p145, %s19, 0
        %s147 = smul.addr %s146, 4
        %s148 = scalar_lea.vmem %s1, %s147
      $region16: #{resblock_forward.6} parent=11 // pred_fallthru
        _
      // Predicated region
      $region17: #{resblock_forward.6} parent=11 // pred_check
        %p149 = pneg %p99
      $region18: #{resblock_forward.6} parent=11 // pred_check_branch
        %151 = sbr.rel (%p149) target = $region20
      $region19: #{resblock_forward.6} parent=11 // pred_region
        %p152 = scmp.lt.s32.totalorder %s19, 0
        %s153 = scalar_select %p152, %s19, 0
        %s154 = smul.addr %s153, 2
        %s155 = scalar_lea.vmem %s2, %s154
      $region20: #{resblock_forward.6} parent=11 // pred_fallthru
        _
    $region12: #{resblock_forward.6} parent=5 // pred_fallthru
      _
    %p156 = scmp.lt.s32.totalorder %s9, 2
    // Predicated region
    $region21: #{resblock_forward.6} parent=5 // pred_check
      %p157 = pneg %p156
    $region22: #{resblock_forward.6} parent=5 // pred_check_branch
      %159 = sbr.rel (%p157) target = $region24
    $region23: #{resblock_forward.6} parent=5 // pred_region
      // Predicated region
      $region25: #{resblock_forward.6} parent=23 // pred_check
        %p160 = pneg %p41
      $region26: #{resblock_forward.6} parent=23 // pred_check_branch
        %162 = sbr.rel (%p160) target = $region28
      $region27: #{resblock_forward.6} parent=23 // pred_region
        %s163 = smul.u32 8, %s16
        %p164 = scmp.lt.s32.totalorder %s163, 15
        %s165 = scalar_select %p164, %s163, 15
        %s166 = smul.addr %s165, 3
        %s167 = smul.addr %s166, 4
        %s168 = scalar_lea.vmem %s0, %s167
        %s169 = smul.u32 8, %s16
      $region28: #{resblock_forward.6} parent=23 // pred_fallthru
        _
    $region24: #{resblock_forward.6} parent=5 // pred_fallthru
      _
    %p170 = scmp.le.s32.totalorder 1, %s9
    %p171 = scmp.lt.s32.totalorder %s9, 3
    %p172 = pnand %p170, %p171
    %p173 = pneg %p172
    // Predicated region
    $region29: #{resblock_forward.6} parent=5 // pred_check
      _
    $region30: #{resblock_forward.6} parent=5 // pred_check_branch
      %175 = sbr.rel (%p172) target = $region32
    $region31: #{resblock_forward.6} parent=5 // pred_region
      %s176 = ssub.s32 %s9, 1
      %s177 = smul.u32 8, %s18
      %p178 = scmp.lt.s32.totalorder %s177, 15
      %s179 = scalar_select %p178, %s177, 15
      %s180 = smul.addr %s179, 3
      %s181 = smul.addr %s180, 4
      %s182 = scalar_lea.vmem %s0, %s181
      %p183 = pneg %p47
      %p184 = pneg %p44
      %p185 = scmp.lt.s32.totalorder %s19, 0
      %s186 = scalar_select %p185, %s19, 0
      %s187 = smul.addr %s186, 4
      %s188 = scalar_lea.vmem %s1, %s187
      %p189 = pneg %p73
      %p190 = pneg %p70
      %p191 = scmp.lt.s32.totalorder %s19, 0
      %s192 = scalar_select %p191, %s19, 0
      %s193 = smul.addr %s192, 2
      %s194 = scalar_lea.vmem %s2, %s193
      %p195 = pneg %p99
      %p196 = pneg %p96
      %p197 = pneg %p127
      %p198 = pneg %p124
      %s199 = smul.u32 8, %s18
      %p200 = scmp.lt.s32.totalorder %s199, 15
      %s201 = scalar_select %p200, %s199, 15
      %p202 = scmp.lt.s32.totalorder %s19, 0
      %s203 = scalar_select %p202, %s19, 0
      %s204 = sadd.s32 %s203, %s201
      %s205 = smul.addr %s204, 4
      %s206 = scalar_lea.vmem %s3, %s205
      %s207 = smul.u32 8, %s18
      %p208 = scmp.lt.s32.totalorder %s207, 15
      %s209 = scalar_select %p208, %s207, 15
      %s210 = smul.addr %s209, 3
      %s211 = smul.addr %s210, 4
      %s212 = scalar_lea.vmem %s0, %s211
      %s213 = smul.u32 8, %s18
      %p214 = scmp.lt.s32.totalorder %s19, 0
      %s215 = scalar_select %p214, %s19, 0
      %s216 = smul.addr %s215, 4
      %s217 = scalar_lea.vmem %s1, %s216
      %p218 = scmp.lt.s32.totalorder %s19, 0
      %s219 = scalar_select %p218, %s19, 0
      %s220 = smul.addr %s219, 2
      %s221 = scalar_lea.vmem %s2, %s220
      %s222 = smul.u32 8, %s18
      %p223 = scmp.lt.s32.totalorder %s222, 15
      %s224 = scalar_select %p223, %s222, 15
      %p225 = scmp.lt.s32.totalorder %s19, 0
      %s226 = scalar_select %p225, %s19, 0
      %s227 = sadd.s32 %s226, %s224
      %s228 = smul.addr %s227, 4
      %s229 = scalar_lea.vmem %s3, %s228
      %s230 = smul.u32 8, %s18
      %v232 = vld [vmem:[%s212] sm:$0xff]
      %v233 = vld [vmem:[%s212 + $0x8] sm:$0xf]
      %v234 = vld [vmem:[%s212 + $0xc] sm:$0xff]
      %v235 = vld [vmem:[%s212 + $0x14] sm:$0xf]
      %v236 = vld [vmem:[%s212 + $0x18] sm:$0xff]
      %v237 = vld [vmem:[%s212 + $0x20] sm:$0xf]
      %v238 = vld [vmem:[%s212 + $0x24] sm:$0xff]
      %v239 = vld [vmem:[%s212 + $0x2c] sm:$0xf]
      %v240 = vld [vmem:[%s212 + $0x30] sm:$0xff]
      %v241 = vld [vmem:[%s212 + $0x38] sm:$0xf]
      %v242 = vld [vmem:[%s212 + $0x3c] sm:$0xff]
      %v243 = vld [vmem:[%s212 + $0x44] sm:$0xf]
      %v244 = vld [vmem:[%s212 + $0x48] sm:$0xff]
      %v245 = vld [vmem:[%s212 + $0x50] sm:$0xf]
      %v246 = vld [vmem:[%s212 + $0x54] sm:$0xff]
      %v247 = vld [vmem:[%s212 + $0x5c] sm:$0xf]
      %v248 = vld [vmem:[%s217] sm:$0xf]
      %v249 = vld [vmem:[%s217 + $0x4] sm:$0xf]
      %v250 = vld [vmem:[%s217 + $0x8] sm:$0xf]
      %v251 = vld [vmem:[%s217 + $0xc] sm:$0xf]
      %v252 = vld [vmem:[%s217 + $0x10] sm:$0xf]
      %v253 = vld [vmem:[%s217 + $0x14] sm:$0xf]
      %v254 = vld [vmem:[%s217 + $0x18] sm:$0xf]
      %v255 = vld [vmem:[%s217 + $0x1c] sm:$0xf]
      %v256 = vld [vmem:[%s217 + $0x20] sm:$0xf]
      %v257 = vld [vmem:[%s217 + $0x24] sm:$0xf]
      %v258 = vld [vmem:[%s217 + $0x28] sm:$0xf]
      %v259 = vld [vmem:[%s217 + $0x2c] sm:$0xf]
      %v260 = vld [vmem:[%s217 + $0x30] sm:$0xf]
      %v261 = vld [vmem:[%s217 + $0x34] sm:$0xf]
      %v262 = vld [vmem:[%s217 + $0x38] sm:$0xf]
      %v263 = vld [vmem:[%s217 + $0x3c] sm:$0xf]
      %v264 = vld [vmem:[%s217 + $0x40] sm:$0xf]
      %v265 = vld [vmem:[%s217 + $0x44] sm:$0xf]
      %v266 = vld [vmem:[%s217 + $0x48] sm:$0xf]
      %v267 = vld [vmem:[%s217 + $0x4c] sm:$0xf]
      %v268 = vld [vmem:[%s217 + $0x50] sm:$0xf]
      %v269 = vld [vmem:[%s217 + $0x54] sm:$0xf]
      %v270 = vld [vmem:[%s217 + $0x58] sm:$0xf]
      %v271 = vld [vmem:[%s217 + $0x5c] sm:$0xf]
      %v272 = vld [vmem:[%s217 + $0x60] sm:$0xf]
      %v273 = vld [vmem:[%s217 + $0x64] sm:$0xf]
      %v274 = vld [vmem:[%s217 + $0x68] sm:$0xf]
      %v275 = vld [vmem:[%s217 + $0x6c] sm:$0xf]
      %v276 = vld [vmem:[%s217 + $0x70] sm:$0xf]
      %v277 = vld [vmem:[%s217 + $0x74] sm:$0xf]
      %v278 = vld [vmem:[%s217 + $0x78] sm:$0xf]
      %v279 = vld [vmem:[%s217 + $0x7c] sm:$0xf]
      %v280 = vld [vmem:[%s217 + $0x80] sm:$0xf]
      %v281 = vld [vmem:[%s217 + $0x84] sm:$0xf]
      %v282 = vld [vmem:[%s217 + $0x88] sm:$0xf]
      %v283 = vld [vmem:[%s217 + $0x8c] sm:$0xf]
      %v284 = vld [vmem:[%s217 + $0x90] sm:$0xf]
      %v285 = vld [vmem:[%s217 + $0x94] sm:$0xf]
      %v286 = vld [vmem:[%s217 + $0x98] sm:$0xf]
      %v287 = vld [vmem:[%s217 + $0x9c] sm:$0xf]
      %v288 = vld [vmem:[%s217 + $0xa0] sm:$0xf]
      %v289 = vld [vmem:[%s217 + $0xa4] sm:$0xf]
      %v290 = vld [vmem:[%s217 + $0xa8] sm:$0xf]
      %v291 = vld [vmem:[%s217 + $0xac] sm:$0xf]
      %v292 = vld [vmem:[%s217 + $0xb0] sm:$0xf]
      %v293 = vld [vmem:[%s217 + $0xb4] sm:$0xf]
      %v294 = vld [vmem:[%s217 + $0xb8] sm:$0xf]
      %v295 = vld [vmem:[%s217 + $0xbc] sm:$0xf]
      %v312 = vunpack.c.l.b16 %v232
      %v313 = vunpack.c.h.b16 %v232
      %v314 = vunpack.c.l.b16 %v233
      %v315 = vunpack.c.l.b16 %v234
      %v316 = vunpack.c.h.b16 %v234
      %v317 = vunpack.c.l.b16 %v235
      %v318 = vunpack.c.l.b16 %v236
      %v319 = vunpack.c.h.b16 %v236
      %v320 = vunpack.c.l.b16 %v237
      %v321 = vunpack.c.l.b16 %v238
      %v322 = vunpack.c.h.b16 %v238
      %v323 = vunpack.c.l.b16 %v239
      %v324 = vunpack.c.l.b16 %v240
      %v325 = vunpack.c.h.b16 %v240
      %v326 = vunpack.c.l.b16 %v241
      %v327 = vunpack.c.l.b16 %v242
      %v328 = vunpack.c.h.b16 %v242
      %v329 = vunpack.c.l.b16 %v243
      %v330 = vunpack.c.l.b16 %v244
      %v331 = vunpack.c.h.b16 %v244
      %v332 = vunpack.c.l.b16 %v245
      %v333 = vunpack.c.l.b16 %v246
      %v334 = vunpack.c.h.b16 %v246
      %v335 = vunpack.c.l.b16 %v247
      %v336 = vpack.c.b16 %v315, %v312
      %v337 = vpack.c.b16 %v316, %v313
      %v338 = vpack.c.b16 %v317, %v314
      %v339 = vpack.c.b16 %v321, %v318
      %v340 = vpack.c.b16 %v322, %v319
      %v341 = vpack.c.b16 %v323, %v320
      %v342 = vpack.c.b16 %v327, %v324
      %v343 = vpack.c.b16 %v328, %v325
      %v344 = vpack.c.b16 %v329, %v326
      %v345 = vpack.c.b16 %v333, %v330
      %v346 = vpack.c.b16 %v334, %v331
      %v347 = vpack.c.b16 %v335, %v332
      %v408 = vunpack.c.l.b16 %v248
      %v409 = vunpack.c.l.b16 %v249
      %v410 = vunpack.c.l.b16 %v250
      %v411 = vunpack.c.l.b16 %v251
      %v412 = vunpack.c.l.b16 %v252
      %v413 = vunpack.c.l.b16 %v253
      %v414 = vunpack.c.l.b16 %v254
      %v415 = vunpack.c.l.b16 %v255
      %v416 = vunpack.c.l.b16 %v256
      %v417 = vunpack.c.l.b16 %v257
      %v418 = vunpack.c.l.b16 %v258
      %v419 = vunpack.c.l.b16 %v259
      %v420 = vunpack.c.l.b16 %v260
      %v421 = vunpack.c.l.b16 %v261
      %v422 = vunpack.c.l.b16 %v262
      %v423 = vunpack.c.l.b16 %v263
      %v424 = vunpack.c.l.b16 %v264
      %v425 = vunpack.c.l.b16 %v265
      %v426 = vunpack.c.l.b16 %v266
      %v427 = vunpack.c.l.b16 %v267
      %v428 = vunpack.c.l.b16 %v268
      %v429 = vunpack.c.l.b16 %v269
      %v430 = vunpack.c.l.b16 %v270
      %v431 = vunpack.c.l.b16 %v271
      %v432 = vunpack.c.l.b16 %v272
      %v433 = vunpack.c.l.b16 %v273
      %v434 = vunpack.c.l.b16 %v274
      %v435 = vunpack.c.l.b16 %v275
      %v436 = vunpack.c.l.b16 %v276
      %v437 = vunpack.c.l.b16 %v277
      %v438 = vunpack.c.l.b16 %v278
      %v439 = vunpack.c.l.b16 %v279
      %v440 = vunpack.c.l.b16 %v280
      %v441 = vunpack.c.l.b16 %v281
      %v442 = vunpack.c.l.b16 %v282
      %v443 = vunpack.c.l.b16 %v283
      %v444 = vunpack.c.l.b16 %v284
      %v445 = vunpack.c.l.b16 %v285
      %v446 = vunpack.c.l.b16 %v286
      %v447 = vunpack.c.l.b16 %v287
      %v448 = vunpack.c.l.b16 %v288
      %v449 = vunpack.c.l.b16 %v289
      %v450 = vunpack.c.l.b16 %v290
      %v451 = vunpack.c.l.b16 %v291
      %v452 = vunpack.c.l.b16 %v292
      %v453 = vunpack.c.l.b16 %v293
      %v454 = vunpack.c.l.b16 %v294
      %v455 = vunpack.c.l.b16 %v295
      %v456 = vpack.c.b16 %v409, %v408
      %v457 = vpack.c.b16 %v411, %v410
      %v458 = vpack.c.b16 %v413, %v412
      %v459 = vpack.c.b16 %v415, %v414
      %v460 = vpack.c.b16 %v417, %v416
      %v461 = vpack.c.b16 %v419, %v418
      %v462 = vpack.c.b16 %v421, %v420
      %v463 = vpack.c.b16 %v423, %v422
      %v464 = vpack.c.b16 %v425, %v424
      %v465 = vpack.c.b16 %v427, %v426
      %v466 = vpack.c.b16 %v429, %v428
      %v467 = vpack.c.b16 %v431, %v430
      %v468 = vpack.c.b16 %v433, %v432
      %v469 = vpack.c.b16 %v435, %v434
      %v470 = vpack.c.b16 %v437, %v436
      %v471 = vpack.c.b16 %v439, %v438
      %v472 = vpack.c.b16 %v441, %v440
      %v473 = vpack.c.b16 %v443, %v442
      %v474 = vpack.c.b16 %v445, %v444
      %v475 = vpack.c.b16 %v447, %v446
      %v476 = vpack.c.b16 %v449, %v448
      %v477 = vpack.c.b16 %v451, %v450
      %v478 = vpack.c.b16 %v453, %v452
      %v479 = vpack.c.b16 %v455, %v454
      %504 = vmatprep.subr.bf16.mxu0 0
      %505 = vmatpush1.bf16.msra.mxu0 %v456
      %506 = vmatprep.subr.bf16.mxu0 0
      %507 = vmatpush1.bf16.msra.mxu0 %v457
      %508 = vmatprep.subr.bf16.mxu0 0
      %509 = vmatpush1.bf16.msra.mxu0 %v458
      %510 = vmatprep.subr.bf16.mxu0 0
      %511 = vmatpush1.bf16.msra.mxu0 %v459
      %512 = vmatprep.subr.bf16.mxu0 0
      %513 = vmatpush1.bf16.msra.mxu0 %v460
      %514 = vmatprep.subr.bf16.mxu0 0
      %515 = vmatpush1.bf16.msra.mxu0 %v461
      %516 = vmatprep.subr.bf16.mxu0 0
      %517 = vmatpush1.bf16.msra.mxu0 %v462
      %518 = vmatprep.subr.bf16.mxu0 0
      %519 = vmatpush1.bf16.msra.mxu0 %v463
      %520 = vmatprep.subr.bf16.mxu0 0
      %521 = vmatpush1.bf16.msra.mxu0 %v464
      %522 = vmatprep.subr.bf16.mxu0 0
      %523 = vmatpush1.bf16.msra.mxu0 %v465
      %524 = vmatprep.subr.bf16.mxu0 0
      %525 = vmatpush1.bf16.msra.mxu0 %v466
      %526 = vmatprep.subr.bf16.mxu0 0
      %527 = vmatpush1.bf16.msra.mxu0 %v467
      %528 = vmatprep.subr.bf16.mxu0 0
      %529 = vmatpush1.bf16.msra.mxu0 %v468
      %530 = vmatprep.subr.bf16.mxu0 0
      %531 = vmatpush1.bf16.msra.mxu0 %v469
      %532 = vmatprep.subr.bf16.mxu0 0
      %533 = vmatpush1.bf16.msra.mxu0 %v470
      %534 = vmatprep.subr.bf16.mxu0 0
      %535 = vmatpush1.bf16.msra.mxu0 %v471
      %536 = vmatprep.mubr.bf16.mxu0 %v337
      %537 = vmatmul.mubr.bf16.gmra.mrb[0].mxu0 %v336
      %v538 = vpop.f32.mrb[0].mxu0
      %v539 = vadd.f32 0.0, %v538
      %v540 = vpop.f32.mrb[0].mxu0
      %v541 = vpop.f32.mrb[0].mxu0
      %v542 = vadd.f32 0.0, %v541
      %v543 = vpop.f32.mrb[0].mxu0
      %544 = vmatprep.mubr.bf16.mxu0 %v340
      %545 = vmatmul.mubr.bf16.gmra.mrb[0].mxu0 %v339
      %v546 = vpop.f32.mrb[0].mxu0
      %v547 = vadd.f32 0.0, %v546
      %v548 = vpop.f32.mrb[0].mxu0
      %v549 = vpop.f32.mrb[0].mxu0
      %v550 = vadd.f32 0.0, %v549
      %v551 = vpop.f32.mrb[0].mxu0
      %552 = vmatprep.mubr.bf16.mxu0 %v343
      %553 = vmatmul.mubr.bf16.gmra.mrb[0].mxu0 %v342
      %v554 = vpop.f32.mrb[0].mxu0
      %v555 = vadd.f32 0.0, %v554
      %v556 = vpop.f32.mrb[0].mxu0
      %v557 = vpop.f32.mrb[0].mxu0
      %v558 = vadd.f32 0.0, %v557
      %v559 = vpop.f32.mrb[0].mxu0
      %560 = vmatprep.mubr.bf16.mxu0 %v346
      %561 = vmatmul.mubr.bf16.gmra.mrb[0].mxu0 %v345
      %v562 = vpop.f32.mrb[0].mxu0
      %v563 = vadd.f32 0.0, %v562
      %v564 = vpop.f32.mrb[0].mxu0
      %v565 = vpop.f32.mrb[0].mxu0
      %v566 = vadd.f32 0.0, %v565
      %v567 = vpop.f32.mrb[0].mxu0
      %568 = vdwg.mxu0
      %569 = vmatprep.subr.bf16.mxu0 0
      %570 = vmatpush1.bf16.msra.mxu0 %v472
      %571 = vmatprep.subr.bf16.mxu0 0
      %572 = vmatpush1.bf16.msra.mxu0 %v473
      %573 = vmatprep.subr.bf16.mxu0 0
      %574 = vmatpush1.bf16.msra.mxu0 %v474
      %575 = vmatprep.subr.bf16.mxu0 0
      %576 = vmatpush1.bf16.msra.mxu0 %v475
      %577 = vmatprep.subr.bf16.mxu0 0
      %578 = vmatpush1.bf16.msra.mxu0 %v476
      %579 = vmatprep.subr.bf16.mxu0 0
      %580 = vmatpush1.bf16.msra.mxu0 %v477
      %581 = vmatprep.subr.bf16.mxu0 0
      %582 = vmatpush1.bf16.msra.mxu0 %v478
      %583 = vmatprep.subr.bf16.mxu0 0
      %584 = vmatpush1.bf16.msra.mxu0 %v479
      %585 = vmatprep.subr.bf16.mxu0 0
      %586 = vmatpush1.bf16.msra.mxu0 0
      %587 = vmatprep.subr.bf16.mxu0 0
      %588 = vmatpush1.bf16.msra.mxu0 0
      %589 = vmatprep.subr.bf16.mxu0 0
      %590 = vmatpush1.bf16.msra.mxu0 0
      %591 = vmatprep.subr.bf16.mxu0 0
      %592 = vmatpush1.bf16.msra.mxu0 0
      %593 = vmatprep.subr.bf16.mxu0 0
      %594 = vmatpush1.bf16.msra.mxu0 0
      %595 = vmatprep.subr.bf16.mxu0 0
      %596 = vmatpush1.bf16.msra.mxu0 0
      %597 = vmatprep.subr.bf16.mxu0 0
      %598 = vmatpush1.bf16.msra.mxu0 0
      %599 = vmatprep.subr.bf16.mxu0 0
      %600 = vmatpush1.bf16.msra.mxu0 0
      %601 = vmatprep.mubr.bf16.mxu0 0
      %602 = vmatmul.mubr.bf16.gmra.mrb[0].mxu0 %v338
      %v603 = vpop.f32.mrb[0].mxu0
      %v604 = vadd.f32 %v539, %v603
      %v605 = vpop.f32.mrb[0].mxu0
      %v606 = vpop.f32.mrb[0].mxu0
      %v607 = vadd.f32 %v542, %v606
      %v608 = vpop.f32.mrb[0].mxu0
      %609 = vmatprep.mubr.bf16.mxu0 0
      %610 = vmatmul.mubr.bf16.gmra.mrb[0].mxu0 %v341
      %v611 = vpop.f32.mrb[0].mxu0
      %v612 = vadd.f32 %v547, %v611
      %v613 = vpop.f32.mrb[0].mxu0
      %v614 = vpop.f32.mrb[0].mxu0
      %v615 = vadd.f32 %v550, %v614
      %v616 = vpop.f32.mrb[0].mxu0
      %617 = vmatprep.mubr.bf16.mxu0 0
      %618 = vmatmul.mubr.bf16.gmra.mrb[0].mxu0 %v344
      %v619 = vpop.f32.mrb[0].mxu0
      %v620 = vadd.f32 %v555, %v619
      %v621 = vpop.f32.mrb[0].mxu0
      %v622 = vpop.f32.mrb[0].mxu0
      %v623 = vadd.f32 %v558, %v622
      %v624 = vpop.f32.mrb[0].mxu0
      %625 = vmatprep.mubr.bf16.mxu0 0
      %626 = vmatmul.mubr.bf16.gmra.mrb[0].mxu0 %v347
      %v627 = vpop.f32.mrb[0].mxu0
      %v628 = vadd.f32 %v563, %v627
      %v629 = vpop.f32.mrb[0].mxu0
      %v630 = vpop.f32.mrb[0].mxu0
      %v631 = vadd.f32 %v566, %v630
      %v632 = vpop.f32.mrb[0].mxu0
      %633 = vdwg.mxu0
      %v634 = vld [vmem:[%s221] sm:$0x3]
      %v635 = vlaneseq
      %v636 = vshrl.u32 %v635, 7
      %v637 = vsub.s32 0, %v636
      %v638 = vrot.slane %v634, %v637
      %v639 = vmul.f32 %v604, %v638
      %v640 = vmul.f32 %v607, %v638
      %v641 = vmul.f32 %v612, %v638
      %v642 = vmul.f32 %v615, %v638
      %v643 = vmul.f32 %v620, %v638
      %v644 = vmul.f32 %v623, %v638
      %v645 = vmul.f32 %v628, %v638
      %v646 = vmul.f32 %v631, %v638
      %v647 = vlaneseq
      %v648 = vshrl.u32 %v647, 7
      %v649 = vsub.s32 1, %v648
      %v650 = vrot.slane %v634, %v649
      %v651 = vadd.f32 %v639, %v650
      %v652 = vadd.f32 %v640, %v650
      %v653 = vadd.f32 %v641, %v650
      %v654 = vadd.f32 %v642, %v650
      %v655 = vadd.f32 %v643, %v650
      %v656 = vadd.f32 %v644, %v650
      %v657 = vadd.f32 %v645, %v650
      %v658 = vadd.f32 %v646, %v650
      %v659 = vmax.f32 %v651, 0.0
      %v660 = vmax.f32 %v652, 0.0
      %v661 = vmax.f32 %v653, 0.0
      %v662 = vmax.f32 %v654, 0.0
      %v663 = vmax.f32 %v655, 0.0
      %v664 = vmax.f32 %v656, 0.0
      %v665 = vmax.f32 %v657, 0.0
      %v666 = vmax.f32 %v658, 0.0
      %v667 = vpack.c.bf16 %v660, %v659
      %v668 = vpack.c.bf16 %v662, %v661
      %v669 = vpack.c.bf16 %v664, %v663
      %v670 = vpack.c.bf16 %v666, %v665
      %v675 = vunpack.c.l.b16 %v667
      %v676 = vunpack.c.h.b16 %v667
      %v677 = vunpack.c.l.b16 %v668
      %v678 = vunpack.c.h.b16 %v668
      %v679 = vunpack.c.l.b16 %v669
      %v680 = vunpack.c.h.b16 %v669
      %v681 = vunpack.c.l.b16 %v670
      %v682 = vunpack.c.h.b16 %v670
      %v683 = vpack.c.b16 %v675, %v675
      %v684 = vpack.c.b16 %v676, %v676
      %v685 = vpack.c.b16 %v677, %v677
      %v686 = vpack.c.b16 %v678, %v678
      %v687 = vpack.c.b16 %v679, %v679
      %v688 = vpack.c.b16 %v680, %v680
      %v689 = vpack.c.b16 %v681, %v681
      %v690 = vpack.c.b16 %v682, %v682
      %699 = vst [vmem:[%s229] sm:$0xf] %v683
      %700 = vst [vmem:[%s229 + $0x4] sm:$0xf] %v684
      %701 = vst [vmem:[%s229 + $0x8] sm:$0xf] %v685
      %702 = vst [vmem:[%s229 + $0xc] sm:$0xf] %v686
      %703 = vst [vmem:[%s229 + $0x10] sm:$0xf] %v687
      %704 = vst [vmem:[%s229 + $0x14] sm:$0xf] %v688
      %705 = vst [vmem:[%s229 + $0x18] sm:$0xf] %v689
      %706 = vst [vmem:[%s229 + $0x1c] sm:$0xf] %v690
      %s707 = smul.u32 8, %s18
      %p708 = scmp.lt.s32.totalorder %s707, 15
      %s709 = scalar_select %p708, %s707, 15
      %p710 = scmp.lt.s32.totalorder %s19, 0
      %s711 = scalar_select %p710, %s19, 0
      %s712 = sadd.s32 %s711, %s709
      %s713 = smul.addr %s712, 4
      %s714 = scalar_lea.vmem %s3, %s713
      // Predicated region
      $region33: #{resblock_forward.6} parent=31 // pred_check
        %p715 = pneg %p124
      $region34: #{resblock_forward.6} parent=31 // pred_check_branch
        %717 = sbr.rel (%p715) target = $region36
      $region35: #{resblock_forward.6} parent=31 // pred_region
        %s718 = smul.u32 8, %s18
      $region36: #{resblock_forward.6} parent=31 // pred_fallthru
        _
    $region32: #{resblock_forward.6} parent=5 // pred_fallthru
      _
    %p719 = scmp.le.s32.totalorder 2, %s9
    // Predicated region
    $region37: #{resblock_forward.6} parent=5 // pred_check
      %p720 = pneg %p719
    $region38: #{resblock_forward.6} parent=5 // pred_check_branch
      %722 = sbr.rel (%p720) target = $region40
    $region39: #{resblock_forward.6} parent=5 // pred_region
      %s723 = ssub.s32 %s9, 2
      // Predicated region
      $region41: #{resblock_forward.6} parent=39 // pred_check
        %p724 = pneg %p130
      $region42: #{resblock_forward.6} parent=39 // pred_check_branch
        %726 = sbr.rel (%p724) target = $region44
      $region43: #{resblock_forward.6} parent=39 // pred_region
        %s727 = smul.u32 8, %s20
        %p728 = scmp.lt.s32.totalorder %s727, 15
        %s729 = scalar_select %p728, %s727, 15
        %p730 = scmp.lt.s32.totalorder %s21, 0
        %s731 = scalar_select %p730, %s21, 0
        %s732 = sadd.s32 %s731, %s729
        %s733 = smul.addr %s732, 4
        %s734 = scalar_lea.vmem %s3, %s733
      $region44: #{resblock_forward.6} parent=39 // pred_fallthru
        _
    $region40: #{resblock_forward.6} parent=5 // pred_fallthru
      _
  $region6: #{resblock_forward.6} parent=0 // loop_footer
    %s13 = sadd.s32 1, %s9
  $region7: #{resblock_forward.6} parent=0 // loop_footer_branch
    %8 = sbr.rel target = $region3
  $region8: #{resblock_forward.6} parent=0 // loop_exit
    _

// kernel: resblock_forward.5
$region0: #{resblock_forward.5}
  #allocation0 [shape = 'u32[]', space=smem, size = 0x4, offset = 0x4, fixed_abs, tag = 'smem constant byte address 0x4 - core index']
  #allocation1 [shape = 'u32[144,128]{1,0:T(1,128)}', space=vmem, size = 0x12000, scoped, tag = 'internal scratch']
  %s0 = inlined_call_operand.vmem [shape: bf16[128,128], index: 0, kind: input, shape index: {}]
  %s1 = inlined_call_operand.vmem [shape: bf16[128,128], index: 1, kind: input, shape index: {}]
  %s2 = inlined_call_operand.vmem [shape: bf16[128,128], index: 2, kind: output, shape index: {}]
  %s3 = sld [smem:[#allocation0]]
  $region41: #{resblock_forward.5} parent=0
    _
  %s5 = ssub.s32 1, %s3
  %s6 = scalar_select 0, %s5, %s3
  loop: start=0, step=1, limit=4
  $region2: #{resblock_forward.5} parent=0 // loop_pre_header
    _
  $region3: #{resblock_forward.5} parent=0 // loop_header
    %s8 = sphi 0, %s12
    %p9 = scmp.ge.s32.totalorder %s8, 4
    %s15 = sphi 0, %s27
    %s16 = sphi 0, %s23
    %s17 = sphi 0, %s15
    %s18 = sphi 0, %s16
    %s19 = sphi 0, %s17
    %s20 = sphi 0, %s18
    %s30 = sphi 0, %s32
    %s33 = sphi 0, %s30
    %s34 = sphi 0, %s33
    %s50 = sphi 0, %s34
    %s56 = sphi 0, %s58
    %s59 = sphi 0, %s56
    %s60 = sphi 0, %s59
    %s76 = sphi 0, %s60
    %s84 = sphi 0, %s86
    %s87 = sphi 0, %s84
    %s88 = sphi 0, %s87
    %s104 = sphi 0, %s88
  $region4: #{resblock_forward.5} parent=0 // loop_header_branch
    %11 = sbr.rel (%p9) target = $region8
  $region5: #{resblock_forward.5} parent=0 // loop_body
    %s13 = ssub.s32 %s8, 1
    %s14 = ssub.s32 %s8, 2
    %s21 = sadd.s32 1, %s16
    %p22 = scmp.ge.s32.totalorder %s21, 1
    %s23 = scalar_select %p22, 0, %s21
    %s24 = sadd.s32 1, %s15
    %s25 = scalar_select %p22, %s24, %s15
    %p26 = scmp.ge.s32.totalorder %s25, 2
    %s27 = scalar_select %p26, 0, %s25
    %s28 = ssub.s32 %s15, %s27
    %p29 = scmp.eq.s32.totalorder %s28, 0
    %s31 = sadd.s32 %s30, 1
    %s32 = scalar_select %p29, %s30, %s31
    %p35 = pneg %p29
    %p36 = scmp.eq.s32.totalorder %s8, 1
    %p37 = por %p35, %p36
    %p38 = scmp.ne.s32.totalorder %s30, %s33
    %p39 = scmp.eq.s32.totalorder %s8, 0
    %p40 = por %p38, %p39
    %p41 = scmp.ne.s32.totalorder %s30, %s33
    %p42 = scmp.eq.s32.totalorder %s13, 1
    %p43 = por %p41, %p42
    %p44 = scmp.ne.s32.totalorder %s33, %s34
    %p45 = scmp.eq.s32.totalorder %s13, 0
    %p46 = por %p44, %p45
    %p47 = scmp.ne.s32.totalorder %s33, %s34
    %p48 = scmp.eq.s32.totalorder %s14, 1
    %p49 = por %p47, %p48
    %p51 = scmp.ne.s32.totalorder %s34, %s50
    %p52 = scmp.eq.s32.totalorder %s14, 0
    %p53 = por %p51, %p52
    %s54 = ssub.s32 %s16, %s23
    %p55 = scmp.eq.s32.totalorder %s54, 0
    %s57 = sadd.s32 %s56, 1
    %s58 = scalar_select %p55, %s56, %s57
    %p61 = pneg %p55
    %p62 = scmp.eq.s32.totalorder %s8, 1
    %p63 = por %p61, %p62
    %p64 = scmp.ne.s32.totalorder %s56, %s59
    %p65 = scmp.eq.s32.totalorder %s8, 0
    %p66 = por %p64, %p65
    %p67 = scmp.ne.s32.totalorder %s56, %s59
    %p68 = scmp.eq.s32.totalorder %s13, 1
    %p69 = por %p67, %p68
    %p70 = scmp.ne.s32.totalorder %s59, %s60
    %p71 = scmp.eq.s32.totalorder %s13, 0
    %p72 = por %p70, %p71
    %p73 = scmp.ne.s32.totalorder %s59, %s60
    %p74 = scmp.eq.s32.totalorder %s14, 1
    %p75 = por %p73, %p74
    %p77 = scmp.ne.s32.totalorder %s60, %s76
    %p78 = scmp.eq.s32.totalorder %s14, 0
    %p79 = por %p77, %p78
    %s80 = ssub.s32 %s15, %s27
    %s81 = ssub.s32 %s16, %s23
    %s82 = sor.u32 %s80, %s81
    %p83 = scmp.eq.s32.totalorder %s82, 0
    %s85 = sadd.s32 %s84, 1
    %s86 = scalar_select %p83, %s84, %s85
    %p89 = pneg %p83
    %p90 = scmp.eq.s32.totalorder %s8, 1
    %p91 = por %p89, %p90
    %p92 = scmp.ne.s32.totalorder %s84, %s87
    %p93 = scmp.eq.s32.totalorder %s8, 0
    %p94 = por %p92, %p93
    %p95 = scmp.ne.s32.totalorder %s84, %s87
    %p96 = scmp.eq.s32.totalorder %s13, 1
    %p97 = por %p95, %p96
    %p98 = scmp.ne.s32.totalorder %s87, %s88
    %p99 = scmp.eq.s32.totalorder %s13, 0
    %p100 = por %p98, %p99
    %p101 = scmp.ne.s32.totalorder %s87, %s88
    %p102 = scmp.eq.s32.totalorder %s14, 1
    %p103 = por %p101, %p102
    %p105 = scmp.ne.s32.totalorder %s88, %s104
    %p106 = scmp.eq.s32.totalorder %s14, 0
    %p107 = por %p105, %p106
    %p108 = scmp.le.s32.totalorder 1, %s8
    %p109 = scmp.lt.s32.totalorder %s8, 3
    %p110 = pnand %p108, %p109
    %p111 = pneg %p110
    // Predicated region
    $region9: #{resblock_forward.5} parent=5 // pred_check
      _
    $region10: #{resblock_forward.5} parent=5 // pred_check_branch
      %113 = sbr.rel (%p110) target = $region12
    $region11: #{resblock_forward.5} parent=5 // pred_region
      %s114 = ssub.s32 %s8, 1
      // Predicated region
      $region13: #{resblock_forward.5} parent=11 // pred_check
        %p115 = pneg %p72
      $region14: #{resblock_forward.5} parent=11 // pred_check_branch
        %117 = sbr.rel (%p115) target = $region16
      $region15: #{resblock_forward.5} parent=11 // pred_region
        %p118 = scmp.lt.s32.totalorder %s18, 0
        %s119 = scalar_select %p118, %s18, 0
        %s120 = smul.addr %s119, 4
        %s121 = scalar_lea.vmem %s1, %s120
      $region16: #{resblock_forward.5} parent=11 // pred_fallthru
        _
    $region12: #{resblock_forward.5} parent=5 // pred_fallthru
      _
    %p122 = scmp.lt.s32.totalorder %s8, 2
    // Predicated region
    $region17: #{resblock_forward.5} parent=5 // pred_check
      %p123 = pneg %p122
    $region18: #{resblock_forward.5} parent=5 // pred_check_branch
      %125 = sbr.rel (%p123) target = $region20
    $region19: #{resblock_forward.5} parent=5 // pred_region
      // Predicated region
      $region21: #{resblock_forward.5} parent=19 // pred_check
        %p126 = pneg %p40
      $region22: #{resblock_forward.5} parent=19 // pred_check_branch
        %128 = sbr.rel (%p126) target = $region24
      $region23: #{resblock_forward.5} parent=19 // pred_region
        %s129 = smul.u32 8, %s15
        %p130 = scmp.lt.s32.totalorder %s129, 15
        %s131 = scalar_select %p130, %s129, 15
        %s132 = smul.addr %s131, 4
        %s133 = scalar_lea.vmem %s0, %s132
        %s134 = smul.u32 8, %s15
      $region24: #{resblock_forward.5} parent=19 // pred_fallthru
        _
    $region20: #{resblock_forward.5} parent=5 // pred_fallthru
      _
    %p135 = scmp.le.s32.totalorder 1, %s8
    %p136 = scmp.lt.s32.totalorder %s8, 3
    %p137 = pnand %p135, %p136
    %p138 = pneg %p137
    // Predicated region
    $region25: #{resblock_forward.5} parent=5 // pred_check
      _
    $region26: #{resblock_forward.5} parent=5 // pred_check_branch
      %140 = sbr.rel (%p137) target = $region28
    $region27: #{resblock_forward.5} parent=5 // pred_region
      %s141 = ssub.s32 %s8, 1
      %s142 = smul.u32 8, %s17
      %p143 = scmp.lt.s32.totalorder %s142, 15
      %s144 = scalar_select %p143, %s142, 15
      %s145 = smul.addr %s144, 4
      %s146 = scalar_lea.vmem %s0, %s145
      %p147 = pneg %p46
      %p148 = pneg %p43
      %p149 = scmp.lt.s32.totalorder %s18, 0
      %s150 = scalar_select %p149, %s18, 0
      %s151 = smul.addr %s150, 4
      %s152 = scalar_lea.vmem %s1, %s151
      %p153 = pneg %p72
      %p154 = pneg %p69
      %p155 = pneg %p100
      %p156 = pneg %p97
      %s157 = smul.u32 8, %s17
      %p158 = scmp.lt.s32.totalorder %s157, 15
      %s159 = scalar_select %p158, %s157, 15
      %p160 = scmp.lt.s32.totalorder %s18, 0
      %s161 = scalar_select %p160, %s18, 0
      %s162 = sadd.s32 %s161, %s159
      %s163 = smul.addr %s162, 4
      %s164 = scalar_lea.vmem %s2, %s163
      %s165 = smul.u32 8, %s17
      %p166 = scmp.lt.s32.totalorder %s165, 15
      %s167 = scalar_select %p166, %s165, 15
      %s168 = smul.addr %s167, 4
      %s169 = scalar_lea.vmem %s0, %s168
      %s170 = smul.u32 8, %s17
      %p171 = scmp.lt.s32.totalorder %s18, 0
      %s172 = scalar_select %p171, %s18, 0
      %s173 = smul.addr %s172, 4
      %s174 = scalar_lea.vmem %s1, %s173
      %s175 = smul.u32 8, %s17
      %p176 = scmp.lt.s32.totalorder %s175, 15
      %s177 = scalar_select %p176, %s175, 15
      %p178 = scmp.lt.s32.totalorder %s18, 0
      %s179 = scalar_select %p178, %s18, 0
      %s180 = sadd.s32 %s179, %s177
      %s181 = smul.addr %s180, 4
      %s182 = scalar_lea.vmem %s2, %s181
      %s183 = smul.u32 8, %s17
      %v185 = vld [vmem:[%s169] sm:$0xf]
      %v186 = vld [vmem:[%s169 + $0x4] sm:$0xf]
      %v187 = vld [vmem:[%s169 + $0x8] sm:$0xf]
      %v188 = vld [vmem:[%s169 + $0xc] sm:$0xf]
      %v189 = vld [vmem:[%s169 + $0x10] sm:$0xf]
      %v190 = vld [vmem:[%s169 + $0x14] sm:$0xf]
      %v191 = vld [vmem:[%s169 + $0x18] sm:$0xf]
      %v192 = vld [vmem:[%s169 + $0x1c] sm:$0xf]
      %v193 = vld [vmem:[%s174] sm:$0xf]
      %v194 = vld [vmem:[%s174 + $0x4] sm:$0xf]
      %v195 = vld [vmem:[%s174 + $0x8] sm:$0xf]
      %v196 = vld [vmem:[%s174 + $0xc] sm:$0xf]
      %v197 = vld [vmem:[%s174 + $0x10] sm:$0xf]
      %v198 = vld [vmem:[%s174 + $0x14] sm:$0xf]
      %v199 = vld [vmem:[%s174 + $0x18] sm:$0xf]
      %v200 = vld [vmem:[%s174 + $0x1c] sm:$0xf]
      %v201 = vld [vmem:[%s174 + $0x20] sm:$0xf]
      %v202 = vld [vmem:[%s174 + $0x24] sm:$0xf]
      %v203 = vld [vmem:[%s174 + $0x28] sm:$0xf]
      %v204 = vld [vmem:[%s174 + $0x2c] sm:$0xf]
      %v205 = vld [vmem:[%s174 + $0x30] sm:$0xf]
      %v206 = vld [vmem:[%s174 + $0x34] sm:$0xf]
      %v207 = vld [vmem:[%s174 + $0x38] sm:$0xf]
      %v208 = vld [vmem:[%s174 + $0x3c] sm:$0xf]
      %v217 = vunpack.c.l.b16 %v185
      %v218 = vunpack.c.l.b16 %v186
      %v219 = vunpack.c.l.b16 %v187
      %v220 = vunpack.c.l.b16 %v188
      %v221 = vunpack.c.l.b16 %v189
      %v222 = vunpack.c.l.b16 %v190
      %v223 = vunpack.c.l.b16 %v191
      %v224 = vunpack.c.l.b16 %v192
      %v225 = vpack.c.b16 %v218, %v217
      %v226 = vpack.c.b16 %v220, %v219
      %v227 = vpack.c.b16 %v222, %v221
      %v228 = vpack.c.b16 %v224, %v223
      %v249 = vunpack.c.l.b16 %v193
      %v250 = vunpack.c.l.b16 %v194
      %v251 = vunpack.c.l.b16 %v195
      %v252 = vunpack.c.l.b16 %v196
      %v253 = vunpack.c.l.b16 %v197
      %v254 = vunpack.c.l.b16 %v198
      %v255 = vunpack.c.l.b16 %v199
      %v256 = vunpack.c.l.b16 %v200
      %v257 = vunpack.c.l.b16 %v201
      %v258 = vunpack.c.l.b16 %v202
      %v259 = vunpack.c.l.b16 %v203
      %v260 = vunpack.c.l.b16 %v204
      %v261 = vunpack.c.l.b16 %v205
      %v262 = vunpack.c.l.b16 %v206
      %v263 = vunpack.c.l.b16 %v207
      %v264 = vunpack.c.l.b16 %v208
      %v265 = vpack.c.b16 %v250, %v249
      %v266 = vpack.c.b16 %v252, %v251
      %v267 = vpack.c.b16 %v254, %v253
      %v268 = vpack.c.b16 %v256, %v255
      %v269 = vpack.c.b16 %v258, %v257
      %v270 = vpack.c.b16 %v260, %v259
      %v271 = vpack.c.b16 %v262, %v261
      %v272 = vpack.c.b16 %v264, %v263
      %281 = vmatprep.subr.bf16.mxu0 0
      %282 = vmatpush1.bf16.msra.mxu0 %v265
      %283 = vmatprep.subr.bf16.mxu0 0
      %284 = vmatpush1.bf16.msra.mxu0 %v266
      %285 = vmatprep.subr.bf16.mxu0 0
      %286 = vmatpush1.bf16.msra.mxu0 %v267
      %287 = vmatprep.subr.bf16.mxu0 0
      %288 = vmatpush1.bf16.msra.mxu0 %v268
      %289 = vmatprep.subr.bf16.mxu0 0
      %290 = vmatpush1.bf16.msra.mxu0 %v269
      %291 = vmatprep.subr.bf16.mxu0 0
      %292 = vmatpush1.bf16.msra.mxu0 %v270
      %293 = vmatprep.subr.bf16.mxu0 0
      %294 = vmatpush1.bf16.msra.mxu0 %v271
      %295 = vmatprep.subr.bf16.mxu0 0
      %296 = vmatpush1.bf16.msra.mxu0 %v272
      %297 = vmatprep.subr.bf16.mxu0 0
      %298 = vmatpush1.bf16.msra.mxu0 0
      %299 = vmatprep.subr.bf16.mxu0 0
      %300 = vmatpush1.bf16.msra.mxu0 0
      %301 = vmatprep.subr.bf16.mxu0 0
      %302 = vmatpush1.bf16.msra.mxu0 0
      %303 = vmatprep.subr.bf16.mxu0 0
      %304 = vmatpush1.bf16.msra.mxu0 0
      %305 = vmatprep.subr.bf16.mxu0 0
      %306 = vmatpush1.bf16.msra.mxu0 0
      %307 = vmatprep.subr.bf16.mxu0 0
      %308 = vmatpush1.bf16.msra.mxu0 0
      %309 = vmatprep.subr.bf16.mxu0 0
      %310 = vmatpush1.bf16.msra.mxu0 0
      %311 = vmatprep.subr.bf16.mxu0 0
      %312 = vmatpush1.bf16.msra.mxu0 0
      %313 = vmatprep.mubr.bf16.mxu0 0
      %314 = vmatmul.mubr.bf16.gmra.mrb[0].mxu0 %v225
      %v315 = vpop.f32.mrb[0].mxu0
      %v316 = vadd.f32 0.0, %v315
      %v317 = vpop.f32.mrb[0].mxu0
      %v318 = vpop.f32.mrb[0].mxu0
      %v319 = vadd.f32 0.0, %v318
      %v320 = vpop.f32.mrb[0].mxu0
      %321 = vmatprep.mubr.bf16.mxu0 0
      %322 = vmatmul.mubr.bf16.gmra.mrb[0].mxu0 %v226
      %v323 = vpop.f32.mrb[0].mxu0
      %v324 = vadd.f32 0.0, %v323
      %v325 = vpop.f32.mrb[0].mxu0
      %v326 = vpop.f32.mrb[0].mxu0
      %v327 = vadd.f32 0.0, %v326
      %v328 = vpop.f32.mrb[0].mxu0
      %329 = vmatprep.mubr.bf16.mxu0 0
      %330 = vmatmul.mubr.bf16.gmra.mrb[0].mxu0 %v227
      %v331 = vpop.f32.mrb[0].mxu0
      %v332 = vadd.f32 0.0, %v331
      %v333 = vpop.f32.mrb[0].mxu0
      %v334 = vpop.f32.mrb[0].mxu0
      %v335 = vadd.f32 0.0, %v334
      %v336 = vpop.f32.mrb[0].mxu0
      %337 = vmatprep.mubr.bf16.mxu0 0
      %338 = vmatmul.mubr.bf16.gmra.mrb[0].mxu0 %v228
      %v339 = vpop.f32.mrb[0].mxu0
      %v340 = vadd.f32 0.0, %v339
      %v341 = vpop.f32.mrb[0].mxu0
      %v342 = vpop.f32.mrb[0].mxu0
      %v343 = vadd.f32 0.0, %v342
      %v344 = vpop.f32.mrb[0].mxu0
      %345 = vdwg.mxu0
      %v346 = vpack.c.bf16 %v319, %v316
      %v347 = vpack.c.bf16 %v327, %v324
      %v348 = vpack.c.bf16 %v335, %v332
      %v349 = vpack.c.bf16 %v343, %v340
      %v354 = vunpack.c.l.b16 %v346
      %v355 = vunpack.c.h.b16 %v346
      %v356 = vunpack.c.l.b16 %v347
      %v357 = vunpack.c.h.b16 %v347
      %v358 = vunpack.c.l.b16 %v348
      %v359 = vunpack.c.h.b16 %v348
      %v360 = vunpack.c.l.b16 %v349
      %v361 = vunpack.c.h.b16 %v349
      %v362 = vpack.c.b16 %v354, %v354
      %v363 = vpack.c.b16 %v355, %v355
      %v364 = vpack.c.b16 %v356, %v356
      %v365 = vpack.c.b16 %v357, %v357
      %v366 = vpack.c.b16 %v358, %v358
      %v367 = vpack.c.b16 %v359, %v359
      %v368 = vpack.c.b16 %v360, %v360
      %v369 = vpack.c.b16 %v361, %v361
      %378 = vst [vmem:[%s182] sm:$0xf] %v362
      %379 = vst [vmem:[%s182 + $0x4] sm:$0xf] %v363
      %380 = vst [vmem:[%s182 + $0x8] sm:$0xf] %v364
      %381 = vst [vmem:[%s182 + $0xc] sm:$0xf] %v365
      %382 = vst [vmem:[%s182 + $0x10] sm:$0xf] %v366
      %383 = vst [vmem:[%s182 + $0x14] sm:$0xf] %v367
      %384 = vst [vmem:[%s182 + $0x18] sm:$0xf] %v368
      %385 = vst [vmem:[%s182 + $0x1c] sm:$0xf] %v369
      %s386 = smul.u32 8, %s17
      %p387 = scmp.lt.s32.totalorder %s386, 15
      %s388 = scalar_select %p387, %s386, 15
      %p389 = scmp.lt.s32.totalorder %s18, 0
      %s390 = scalar_select %p389, %s18, 0
      %s391 = sadd.s32 %s390, %s388
      %s392 = smul.addr %s391, 4
      %s393 = scalar_lea.vmem %s2, %s392
      // Predicated region
      $region29: #{resblock_forward.5} parent=27 // pred_check
        %p394 = pneg %p97
      $region30: #{resblock_forward.5} parent=27 // pred_check_branch
        %396 = sbr.rel (%p394) target = $region32
      $region31: #{resblock_forward.5} parent=27 // pred_region
        %s397 = smul.u32 8, %s17
      $region32: #{resblock_forward.5} parent=27 // pred_fallthru
        _
    $region28: #{resblock_forward.5} parent=5 // pred_fallthru
      _
    %p398 = scmp.le.s32.totalorder 2, %s8
    // Predicated region
    $region33: #{resblock_forward.5} parent=5 // pred_check
      %p399 = pneg %p398
    $region34: #{resblock_forward.5} parent=5 // pred_check_branch
      %401 = sbr.rel (%p399) target = $region36
    $region35: #{resblock_forward.5} parent=5 // pred_region
      %s402 = ssub.s32 %s8, 2
      // Predicated region
      $region37: #{resblock_forward.5} parent=35 // pred_check
        %p403 = pneg %p103
      $region38: #{resblock_forward.5} parent=35 // pred_check_branch
        %405 = sbr.rel (%p403) target = $region40
      $region39: #{resblock_forward.5} parent=35 // pred_region
        %s406 = smul.u32 8, %s19
        %p407 = scmp.lt.s32.totalorder %s406, 15
        %s408 = scalar_select %p407, %s406, 15
        %p409 = scmp.lt.s32.totalorder %s20, 0
        %s410 = scalar_select %p409, %s20, 0
        %s411 = sadd.s32 %s410, %s408
        %s412 = smul.addr %s411, 4
        %s413 = scalar_lea.vmem %s2, %s412
      $region40: #{resblock_forward.5} parent=35 // pred_fallthru
        _
    $region36: #{resblock_forward.5} parent=5 // pred_fallthru
      _
  $region6: #{resblock_forward.5} parent=0 // loop_footer
    %s12 = sadd.s32 1, %s8
  $region7: #{resblock_forward.5} parent=0 // loop_footer_branch
    %7 = sbr.rel target = $region3
  $region8: #{resblock_forward.5} parent=0 // loop_exit
    _

// kernel: resblock_forward.7
$region0: #{resblock_forward.7}
  #allocation0 [shape = 'u32[]', space=smem, size = 0x4, offset = 0x4, fixed_abs, tag = 'smem constant byte address 0x4 - core index']
  #allocation1 [shape = 'u32[144,128]{1,0:T(1,128)}', space=vmem, size = 0x12000, scoped, tag = 'internal scratch']
  %s0 = inlined_call_operand.vmem [shape: bf16[128,640], index: 0, kind: input, shape index: {}]
  %s1 = inlined_call_operand.vmem [shape: bf16[640,128], index: 1, kind: input, shape index: {}]
  %s2 = inlined_call_operand.vmem [shape: bf16[128,128], index: 2, kind: input, shape index: {}]
  %s3 = inlined_call_operand.hbm [shape: f32[128,128], index: 3, kind: output, shape index: {}]
  %s4 = sld [smem:[#allocation0]]
  $region45: #{resblock_forward.7} parent=0
    _
  %s6 = ssub.s32 1, %s4
  %s7 = scalar_select 0, %s6, %s4
  $region1: #{resblock_forward.7} parent=0
    #allocation2 [shape = 'u8[65536]{0}', space=vmem, size = 0x10000, scoped, tag = 'output window, operand 0']
    #allocation3 [shape = 's32[2]{0}', space=sflag, size = 0x8, scoped, tag = 'scoped memory for resblock_forward.7']
    %8 = vsyncpa [#allocation3], 0
    %s9 = scalar_lea.sflag [#allocation3], 1
    %10 = vsyncpa %s9, 0
    loop: start=0, step=1, limit=4
    $region2: #{resblock_forward.7} parent=1 // loop_pre_header
      _
    $region3: #{resblock_forward.7} parent=1 // loop_header
      %s12 = sphi 0, %s16
      %p13 = scmp.ge.s32.totalorder %s12, 4
      %s19 = sphi 0, %s31
      %s20 = sphi 0, %s27
      %s21 = sphi 0, %s19
      %s22 = sphi 0, %s20
      %s23 = sphi 0, %s21
      %s24 = sphi 0, %s22
      %s34 = sphi 0, %s36
      %s37 = sphi 0, %s34
      %s38 = sphi 0, %s37
      %s54 = sphi 0, %s38
      %s60 = sphi 0, %s62
      %s63 = sphi 0, %s60
      %s64 = sphi 0, %s63
      %s80 = sphi 0, %s64
      %s88 = sphi 0, %s90
      %s91 = sphi 0, %s88
      %s92 = sphi 0, %s91
      %s108 = sphi 0, %s92
      %s116 = sphi 0, %s118
      %s119 = sphi 0, %s116
      %s120 = sphi 0, %s119
      %s136 = sphi 0, %s120
    $region4: #{resblock_forward.7} parent=1 // loop_header_branch
      %15 = sbr.rel (%p13) target = $region8
    $region5: #{resblock_forward.7} parent=1 // loop_body
      %s17 = ssub.s32 %s12, 1
      %s18 = ssub.s32 %s12, 2
      %s25 = sadd.s32 1, %s20
      %p26 = scmp.ge.s32.totalorder %s25, 1
      %s27 = scalar_select %p26, 0, %s25
      %s28 = sadd.s32 1, %s19
      %s29 = scalar_select %p26, %s28, %s19
      %p30 = scmp.ge.s32.totalorder %s29, 2
      %s31 = scalar_select %p30, 0, %s29
      %s32 = ssub.s32 %s19, %s31
      %p33 = scmp.eq.s32.totalorder %s32, 0
      %s35 = sadd.s32 %s34, 1
      %s36 = scalar_select %p33, %s34, %s35
      %p39 = pneg %p33
      %p40 = scmp.eq.s32.totalorder %s12, 1
      %p41 = por %p39, %p40
      %p42 = scmp.ne.s32.totalorder %s34, %s37
      %p43 = scmp.eq.s32.totalorder %s12, 0
      %p44 = por %p42, %p43
      %p45 = scmp.ne.s32.totalorder %s34, %s37
      %p46 = scmp.eq.s32.totalorder %s17, 1
      %p47 = por %p45, %p46
      %p48 = scmp.ne.s32.totalorder %s37, %s38
      %p49 = scmp.eq.s32.totalorder %s17, 0
      %p50 = por %p48, %p49
      %p51 = scmp.ne.s32.totalorder %s37, %s38
      %p52 = scmp.eq.s32.totalorder %s18, 1
      %p53 = por %p51, %p52
      %p55 = scmp.ne.s32.totalorder %s38, %s54
      %p56 = scmp.eq.s32.totalorder %s18, 0
      %p57 = por %p55, %p56
      %s58 = ssub.s32 %s20, %s27
      %p59 = scmp.eq.s32.totalorder %s58, 0
      %s61 = sadd.s32 %s60, 1
      %s62 = scalar_select %p59, %s60, %s61
      %p65 = pneg %p59
      %p66 = scmp.eq.s32.totalorder %s12, 1
      %p67 = por %p65, %p66
      %p68 = scmp.ne.s32.totalorder %s60, %s63
      %p69 = scmp.eq.s32.totalorder %s12, 0
      %p70 = por %p68, %p69
      %p71 = scmp.ne.s32.totalorder %s60, %s63
      %p72 = scmp.eq.s32.totalorder %s17, 1
      %p73 = por %p71, %p72
      %p74 = scmp.ne.s32.totalorder %s63, %s64
      %p75 = scmp.eq.s32.totalorder %s17, 0
      %p76 = por %p74, %p75
      %p77 = scmp.ne.s32.totalorder %s63, %s64
      %p78 = scmp.eq.s32.totalorder %s18, 1
      %p79 = por %p77, %p78
      %p81 = scmp.ne.s32.totalorder %s64, %s80
      %p82 = scmp.eq.s32.totalorder %s18, 0
      %p83 = por %p81, %p82
      %s84 = ssub.s32 %s19, %s31
      %s85 = ssub.s32 %s20, %s27
      %s86 = sor.u32 %s84, %s85
      %p87 = scmp.eq.s32.totalorder %s86, 0
      %s89 = sadd.s32 %s88, 1
      %s90 = scalar_select %p87, %s88, %s89
      %p93 = pneg %p87
      %p94 = scmp.eq.s32.totalorder %s12, 1
      %p95 = por %p93, %p94
      %p96 = scmp.ne.s32.totalorder %s88, %s91
      %p97 = scmp.eq.s32.totalorder %s12, 0
      %p98 = por %p96, %p97
      %p99 = scmp.ne.s32.totalorder %s88, %s91
      %p100 = scmp.eq.s32.totalorder %s17, 1
      %p101 = por %p99, %p100
      %p102 = scmp.ne.s32.totalorder %s91, %s92
      %p103 = scmp.eq.s32.totalorder %s17, 0
      %p104 = por %p102, %p103
      %p105 = scmp.ne.s32.totalorder %s91, %s92
      %p106 = scmp.eq.s32.totalorder %s18, 1
      %p107 = por %p105, %p106
      %p109 = scmp.ne.s32.totalorder %s92, %s108
      %p110 = scmp.eq.s32.totalorder %s18, 0
      %p111 = por %p109, %p110
      %s112 = ssub.s32 %s19, %s31
      %s113 = ssub.s32 %s20, %s27
      %s114 = sor.u32 %s112, %s113
      %p115 = scmp.eq.s32.totalorder %s114, 0
      %s117 = sadd.s32 %s116, 1
      %s118 = scalar_select %p115, %s116, %s117
      %p121 = pneg %p115
      %p122 = scmp.eq.s32.totalorder %s12, 1
      %p123 = por %p121, %p122
      %p124 = scmp.ne.s32.totalorder %s116, %s119
      %p125 = scmp.eq.s32.totalorder %s12, 0
      %p126 = por %p124, %p125
      %p127 = scmp.ne.s32.totalorder %s116, %s119
      %p128 = scmp.eq.s32.totalorder %s17, 1
      %p129 = por %p127, %p128
      %p130 = scmp.ne.s32.totalorder %s119, %s120
      %p131 = scmp.eq.s32.totalorder %s17, 0
      %p132 = por %p130, %p131
      %p133 = scmp.ne.s32.totalorder %s119, %s120
      %p134 = scmp.eq.s32.totalorder %s18, 1
      %p135 = por %p133, %p134
      %p137 = scmp.ne.s32.totalorder %s120, %s136
      %p138 = scmp.eq.s32.totalorder %s18, 0
      %p139 = por %p137, %p138
      %p140 = scmp.le.s32.totalorder 1, %s12
      %p141 = scmp.lt.s32.totalorder %s12, 3
      %p142 = pnand %p140, %p141
      %p143 = pneg %p142
      // Predicated region
      $region9: #{resblock_forward.7} parent=5 // pred_check
        _
      $region10: #{resblock_forward.7} parent=5 // pred_check_branch
        %145 = sbr.rel (%p142) target = $region12
      $region11: #{resblock_forward.7} parent=5 // pred_region
        %s146 = ssub.s32 %s12, 1
        // Predicated region
        $region13: #{resblock_forward.7} parent=11 // pred_check
          %p147 = pneg %p76
        $region14: #{resblock_forward.7} parent=11 // pred_check_branch
          %149 = sbr.rel (%p147) target = $region16
        $region15: #{resblock_forward.7} parent=11 // pred_region
          %p150 = scmp.lt.s32.totalorder %s22, 0
          %s151 = scalar_select %p150, %s22, 0
          %s152 = smul.addr %s151, 4
          %s153 = scalar_lea.vmem %s1, %s152
        $region16: #{resblock_forward.7} parent=11 // pred_fallthru
          _
      $region12: #{resblock_forward.7} parent=5 // pred_fallthru
        _
      %p154 = scmp.lt.s32.totalorder %s12, 2
      // Predicated region
      $region17: #{resblock_forward.7} parent=5 // pred_check
        %p155 = pneg %p154
      $region18: #{resblock_forward.7} parent=5 // pred_check_branch
        %157 = sbr.rel (%p155) target = $region20
      $region19: #{resblock_forward.7} parent=5 // pred_region
        // Predicated region
        $region21: #{resblock_forward.7} parent=19 // pred_check
          %p158 = pneg %p44
        $region22: #{resblock_forward.7} parent=19 // pred_check_branch
          %160 = sbr.rel (%p158) target = $region24
        $region23: #{resblock_forward.7} parent=19 // pred_region
          %s161 = smul.u32 8, %s19
          %p162 = scmp.lt.s32.totalorder %s161, 15
          %s163 = scalar_select %p162, %s161, 15
          %s164 = smul.addr %s163, 5
          %s165 = smul.addr %s164, 4
          %s166 = scalar_lea.vmem %s0, %s165
          %s167 = smul.u32 8, %s19
        $region24: #{resblock_forward.7} parent=19 // pred_fallthru
          _
        // Predicated region
        $region25: #{resblock_forward.7} parent=19 // pred_check
          %p168 = pneg %p98
        $region26: #{resblock_forward.7} parent=19 // pred_check_branch
          %170 = sbr.rel (%p168) target = $region28
        $region27: #{resblock_forward.7} parent=19 // pred_region
          %s171 = smul.u32 8, %s19
          %p172 = scmp.lt.s32.totalorder %s171, 15
          %s173 = scalar_select %p172, %s171, 15
          %p174 = scmp.lt.s32.totalorder %s20, 0
          %s175 = scalar_select %p174, %s20, 0
          %s176 = sadd.s32 %s175, %s173
          %s177 = smul.addr %s176, 4
          %s178 = scalar_lea.vmem %s2, %s177
          %s179 = smul.u32 8, %s19
        $region28: #{resblock_forward.7} parent=19 // pred_fallthru
          _
      $region20: #{resblock_forward.7} parent=5 // pred_fallthru
        _
      %p180 = scmp.le.s32.totalorder 1, %s12
      %p181 = scmp.lt.s32.totalorder %s12, 3
      %p182 = pnand %p180, %p181
      %p183 = pneg %p182
      // Predicated region
      $region29: #{resblock_forward.7} parent=5 // pred_check
        _
      $region30: #{resblock_forward.7} parent=5 // pred_check_branch
        %185 = sbr.rel (%p182) target = $region32
      $region31: #{resblock_forward.7} parent=5 // pred_region
        %s186 = ssub.s32 %s12, 1
        %s187 = smul.u32 8, %s21
        %p188 = scmp.lt.s32.totalorder %s187, 15
        %s189 = scalar_select %p188, %s187, 15
        %s190 = smul.addr %s189, 5
        %s191 = smul.addr %s190, 4
        %s192 = scalar_lea.vmem %s0, %s191
        %p193 = pneg %p50
        %p194 = pneg %p47
        %p195 = scmp.lt.s32.totalorder %s22, 0
        %s196 = scalar_select %p195, %s22, 0
        %s197 = smul.addr %s196, 4
        %s198 = scalar_lea.vmem %s1, %s197
        %p199 = pneg %p76
        %p200 = pneg %p73
        %s201 = smul.u32 8, %s21
        %p202 = scmp.lt.s32.totalorder %s201, 15
        %s203 = scalar_select %p202, %s201, 15
        %p204 = scmp.lt.s32.totalorder %s22, 0
        %s205 = scalar_select %p204, %s22, 0
        %s206 = sadd.s32 %s205, %s203
        %s207 = smul.addr %s206, 4
        %s208 = scalar_lea.vmem %s2, %s207
        %p209 = pneg %p104
        %p210 = pneg %p101
        %p211 = pneg %p132
        %p212 = pneg %p129
        %s213 = sand.u32 %s119, 1
        %s214 = scalar_lea.sflag [#allocation3], %s213
        %s215 = sand.u32 %s119, 1
        %s216 = smul.addr %s215, 64
        %s217 = scalar_lea.vmem [#allocation2], %s216
        %s218 = smul.u32 8, %s21
        %p219 = scmp.lt.s32.totalorder %s218, 15
        %s220 = scalar_select %p219, %s218, 15
        %s221 = smul.addr %s220, 5
        %s222 = smul.addr %s221, 4
        %s223 = scalar_lea.vmem %s0, %s222
        %s224 = smul.u32 8, %s21
        %p225 = scmp.lt.s32.totalorder %s22, 0
        %s226 = scalar_select %p225, %s22, 0
        %s227 = smul.addr %s226, 4
        %s228 = scalar_lea.vmem %s1, %s227
        %s229 = smul.u32 8, %s21
        %p230 = scmp.lt.s32.totalorder %s229, 15
        %s231 = scalar_select %p230, %s229, 15
        %p232 = scmp.lt.s32.totalorder %s22, 0
        %s233 = scalar_select %p232, %s22, 0
        %s234 = sadd.s32 %s233, %s231
        %s235 = smul.addr %s234, 4
        %s236 = scalar_lea.vmem %s2, %s235
        %s237 = smul.u32 8, %s21
        %s238 = smul.u32 8, %s21
        %v240 = vld [vmem:[%s223] sm:$0xff]
        %v241 = vld [vmem:[%s223 + $0x8] sm:$0xff]
        %v242 = vld [vmem:[%s223 + $0x10] sm:$0xf]
        %v243 = vld [vmem:[%s223 + $0x14] sm:$0xff]
        %v244 = vld [vmem:[%s223 + $0x1c] sm:$0xff]
        %v245 = vld [vmem:[%s223 + $0x24] sm:$0xf]
        %v246 = vld [vmem:[%s223 + $0x28] sm:$0xff]
        %v247 = vld [vmem:[%s223 + $0x30] sm:$0xff]
        %v248 = vld [vmem:[%s223 + $0x38] sm:$0xf]
        %v249 = vld [vmem:[%s223 + $0x3c] sm:$0xff]
        %v250 = vld [vmem:[%s223 + $0x44] sm:$0xff]
        %v251 = vld [vmem:[%s223 + $0x4c] sm:$0xf]
        %v252 = vld [vmem:[%s223 + $0x50] sm:$0xff]
        %v253 = vld [vmem:[%s223 + $0x58] sm:$0xff]
        %v254 = vld [vmem:[%s223 + $0x60] sm:$0xf]
        %v255 = vld [vmem:[%s223 + $0x64] sm:$0xff]
        %v256 = vld [vmem:[%s223 + $0x6c] sm:$0xff]
        %v257 = vld [vmem:[%s223 + $0x74] sm:$0xf]
        %v258 = vld [vmem:[%s223 + $0x78] sm:$0xff]
        %v259 = vld [vmem:[%s223 + $0x80] sm:$0xff]
        %v260 = vld [vmem:[%s223 + $0x88] sm:$0xf]
        %v261 = vld [vmem:[%s223 + $0x8c] sm:$0xff]
        %v262 = vld [vmem:[%s223 + $0x94] sm:$0xff]
        %v263 = vld [vmem:[%s223 + $0x9c] sm:$0xf]
        %v264 = vld [vmem:[%s228] sm:$0xf]
        %v265 = vld [vmem:[%s228 + $0x4] sm:$0xf]
        %v266 = vld [vmem:[%s228 + $0x8] sm:$0xf]
        %v267 = vld [vmem:[%s228 + $0xc] sm:$0xf]
        %v268 = vld [vmem:[%s228 + $0x10] sm:$0xf]
        %v269 = vld [vmem:[%s228 + $0x14] sm:$0xf]
        %v270 = vld [vmem:[%s228 + $0x18] sm:$0xf]
        %v271 = vld [vmem:[%s228 + $0x1c] sm:$0xf]
        %v272 = vld [vmem:[%s228 + $0x20] sm:$0xf]
        %v273 = vld [vmem:[%s228 + $0x24] sm:$0xf]
        %v274 = vld [vmem:[%s228 + $0x28] sm:$0xf]
        %v275 = vld [vmem:[%s228 + $0x2c] sm:$0xf]
        %v276 = vld [vmem:[%s228 + $0x30] sm:$0xf]
        %v277 = vld [vmem:[%s228 + $0x34] sm:$0xf]
        %v278 = vld [vmem:[%s228 + $0x38] sm:$0xf]
        %v279 = vld [vmem:[%s228 + $0x3c] sm:$0xf]
        %v280 = vld [vmem:[%s228 + $0x40] sm:$0xf]
        %v281 = vld [vmem:[%s228 + $0x44] sm:$0xf]
        %v282 = vld [vmem:[%s228 + $0x48] sm:$0xf]
        %v283 = vld [vmem:[%s228 + $0x4c] sm:$0xf]
        %v284 = vld [vmem:[%s228 + $0x50] sm:$0xf]
        %v285 = vld [vmem:[%s228 + $0x54] sm:$0xf]
        %v286 = vld [vmem:[%s228 + $0x58] sm:$0xf]
        %v287 = vld [vmem:[%s228 + $0x5c] sm:$0xf]
        %v288 = vld [vmem:[%s228 + $0x60] sm:$0xf]
        %v289 = vld [vmem:[%s228 + $0x64] sm:$0xf]
        %v290 = vld [vmem:[%s228 + $0x68] sm:$0xf]
        %v291 = vld [vmem:[%s228 + $0x6c] sm:$0xf]
        %v292 = vld [vmem:[%s228 + $0x70] sm:$0xf]
        %v293 = vld [vmem:[%s228 + $0x74] sm:$0xf]
        %v294 = vld [vmem:[%s228 + $0x78] sm:$0xf]
        %v295 = vld [vmem:[%s228 + $0x7c] sm:$0xf]
        %v296 = vld [vmem:[%s228 + $0x80] sm:$0xf]
        %v297 = vld [vmem:[%s228 + $0x84] sm:$0xf]
        %v298 = vld [vmem:[%s228 + $0x88] sm:$0xf]
        %v299 = vld [vmem:[%s228 + $0x8c] sm:$0xf]
        %v300 = vld [vmem:[%s228 + $0x90] sm:$0xf]
        %v301 = vld [vmem:[%s228 + $0x94] sm:$0xf]
        %v302 = vld [vmem:[%s228 + $0x98] sm:$0xf]
        %v303 = vld [vmem:[%s228 + $0x9c] sm:$0xf]
        %v304 = vld [vmem:[%s228 + $0xa0] sm:$0xf]
        %v305 = vld [vmem:[%s228 + $0xa4] sm:$0xf]
        %v306 = vld [vmem:[%s228 + $0xa8] sm:$0xf]
        %v307 = vld [vmem:[%s228 + $0xac] sm:$0xf]
        %v308 = vld [vmem:[%s228 + $0xb0] sm:$0xf]
        %v309 = vld [vmem:[%s228 + $0xb4] sm:$0xf]
        %v310 = vld [vmem:[%s228 + $0xb8] sm:$0xf]
        %v311 = vld [vmem:[%s228 + $0xbc] sm:$0xf]
        %v312 = vld [vmem:[%s228 + $0xc0] sm:$0xf]
        %v313 = vld [vmem:[%s228 + $0xc4] sm:$0xf]
        %v314 = vld [vmem:[%s228 + $0xc8] sm:$0xf]
        %v315 = vld [vmem:[%s228 + $0xcc] sm:$0xf]
        %v316 = vld [vmem:[%s228 + $0xd0] sm:$0xf]
        %v317 = vld [vmem:[%s228 + $0xd4] sm:$0xf]
        %v318 = vld [vmem:[%s228 + $0xd8] sm:$0xf]
        %v319 = vld [vmem:[%s228 + $0xdc] sm:$0xf]
        %v320 = vld [vmem:[%s228 + $0xe0] sm:$0xf]
        %v321 = vld [vmem:[%s228 + $0xe4] sm:$0xf]
        %v322 = vld [vmem:[%s228 + $0xe8] sm:$0xf]
        %v323 = vld [vmem:[%s228 + $0xec] sm:$0xf]
        %v324 = vld [vmem:[%s228 + $0xf0] sm:$0xf]
        %v325 = vld [vmem:[%s228 + $0xf4] sm:$0xf]
        %v326 = vld [vmem:[%s228 + $0xf8] sm:$0xf]
        %v327 = vld [vmem:[%s228 + $0xfc] sm:$0xf]
        %v328 = vld [vmem:[%s228 + $0x100] sm:$0xf]
        %v329 = vld [vmem:[%s228 + $0x104] sm:$0xf]
        %v330 = vld [vmem:[%s228 + $0x108] sm:$0xf]
        %v331 = vld [vmem:[%s228 + $0x10c] sm:$0xf]
        %v332 = vld [vmem:[%s228 + $0x110] sm:$0xf]
        %v333 = vld [vmem:[%s228 + $0x114] sm:$0xf]
        %v334 = vld [vmem:[%s228 + $0x118] sm:$0xf]
        %v335 = vld [vmem:[%s228 + $0x11c] sm:$0xf]
        %v336 = vld [vmem:[%s228 + $0x120] sm:$0xf]
        %v337 = vld [vmem:[%s228 + $0x124] sm:$0xf]
        %v338 = vld [vmem:[%s228 + $0x128] sm:$0xf]
        %v339 = vld [vmem:[%s228 + $0x12c] sm:$0xf]
        %v340 = vld [vmem:[%s228 + $0x130] sm:$0xf]
        %v341 = vld [vmem:[%s228 + $0x134] sm:$0xf]
        %v342 = vld [vmem:[%s228 + $0x138] sm:$0xf]
        %v343 = vld [vmem:[%s228 + $0x13c] sm:$0xf]
        %v344 = vld [vmem:[%s236] sm:$0xf]
        %v345 = vld [vmem:[%s236 + $0x4] sm:$0xf]
        %v346 = vld [vmem:[%s236 + $0x8] sm:$0xf]
        %v347 = vld [vmem:[%s236 + $0xc] sm:$0xf]
        %v348 = vld [vmem:[%s236 + $0x10] sm:$0xf]
        %v349 = vld [vmem:[%s236 + $0x14] sm:$0xf]
        %v350 = vld [vmem:[%s236 + $0x18] sm:$0xf]
        %v351 = vld [vmem:[%s236 + $0x1c] sm:$0xf]
        %v352 = vunpack.c.l.bf16 %v344
        %v353 = vunpack.c.l.bf16 %v345
        %v354 = vunpack.c.l.bf16 %v346
        %v355 = vunpack.c.l.bf16 %v347
        %v356 = vunpack.c.l.bf16 %v348
        %v357 = vunpack.c.l.bf16 %v349
        %v358 = vunpack.c.l.bf16 %v350
        %v359 = vunpack.c.l.bf16 %v351
        %v384 = vunpack.c.l.b16 %v240
        %v385 = vunpack.c.h.b16 %v240
        %v386 = vunpack.c.l.b16 %v241
        %v387 = vunpack.c.h.b16 %v241
        %v388 = vunpack.c.l.b16 %v242
        %v389 = vunpack.c.l.b16 %v243
        %v390 = vunpack.c.h.b16 %v243
        %v391 = vunpack.c.l.b16 %v244
        %v392 = vunpack.c.h.b16 %v244
        %v393 = vunpack.c.l.b16 %v245
        %v394 = vunpack.c.l.b16 %v246
        %v395 = vunpack.c.h.b16 %v246
        %v396 = vunpack.c.l.b16 %v247
        %v397 = vunpack.c.h.b16 %v247
        %v398 = vunpack.c.l.b16 %v248
        %v399 = vunpack.c.l.b16 %v249
        %v400 = vunpack.c.h.b16 %v249
        %v401 = vunpack.c.l.b16 %v250
        %v402 = vunpack.c.h.b16 %v250
        %v403 = vunpack.c.l.b16 %v251
        %v404 = vunpack.c.l.b16 %v252
        %v405 = vunpack.c.h.b16 %v252
        %v406 = vunpack.c.l.b16 %v253
        %v407 = vunpack.c.h.b16 %v253
        %v408 = vunpack.c.l.b16 %v254
        %v409 = vunpack.c.l.b16 %v255
        %v410 = vunpack.c.h.b16 %v255
        %v411 = vunpack.c.l.b16 %v256
        %v412 = vunpack.c.h.b16 %v256
        %v413 = vunpack.c.l.b16 %v257
        %v414 = vunpack.c.l.b16 %v258
        %v415 = vunpack.c.h.b16 %v258
        %v416 = vunpack.c.l.b16 %v259
        %v417 = vunpack.c.h.b16 %v259
        %v418 = vunpack.c.l.b16 %v260
        %v419 = vunpack.c.l.b16 %v261
        %v420 = vunpack.c.h.b16 %v261
        %v421 = vunpack.c.l.b16 %v262
        %v422 = vunpack.c.h.b16 %v262
        %v423 = vunpack.c.l.b16 %v263
        %v424 = vpack.c.b16 %v389, %v384
        %v425 = vpack.c.b16 %v390, %v385
        %v426 = vpack.c.b16 %v391, %v386
        %v427 = vpack.c.b16 %v392, %v387
        %v428 = vpack.c.b16 %v393, %v388
        %v429 = vpack.c.b16 %v399, %v394
        %v430 = vpack.c.b16 %v400, %v395
        %v431 = vpack.c.b16 %v401, %v396
        %v432 = vpack.c.b16 %v402, %v397
        %v433 = vpack.c.b16 %v403, %v398
        %v434 = vpack.c.b16 %v409, %v404
        %v435 = vpack.c.b16 %v410, %v405
        %v436 = vpack.c.b16 %v411, %v406
        %v437 = vpack.c.b16 %v412, %v407
        %v438 = vpack.c.b16 %v413, %v408
        %v439 = vpack.c.b16 %v419, %v414
        %v440 = vpack.c.b16 %v420, %v415
        %v441 = vpack.c.b16 %v421, %v416
        %v442 = vpack.c.b16 %v422, %v417
        %v443 = vpack.c.b16 %v423, %v418
        %v544 = vunpack.c.l.b16 %v264
        %v545 = vunpack.c.l.b16 %v265
        %v546 = vunpack.c.l.b16 %v266
        %v547 = vunpack.c.l.b16 %v267
        %v548 = vunpack.c.l.b16 %v268
        %v549 = vunpack.c.l.b16 %v269
        %v550 = vunpack.c.l.b16 %v270
        %v551 = vunpack.c.l.b16 %v271
        %v552 = vunpack.c.l.b16 %v272
        %v553 = vunpack.c.l.b16 %v273
        %v554 = vunpack.c.l.b16 %v274
        %v555 = vunpack.c.l.b16 %v275
        %v556 = vunpack.c.l.b16 %v276
        %v557 = vunpack.c.l.b16 %v277
        %v558 = vunpack.c.l.b16 %v278
        %v559 = vunpack.c.l.b16 %v279
        %v560 = vunpack.c.l.b16 %v280
        %v561 = vunpack.c.l.b16 %v281
        %v562 = vunpack.c.l.b16 %v282
        %v563 = vunpack.c.l.b16 %v283
        %v564 = vunpack.c.l.b16 %v284
        %v565 = vunpack.c.l.b16 %v285
        %v566 = vunpack.c.l.b16 %v286
        %v567 = vunpack.c.l.b16 %v287
        %v568 = vunpack.c.l.b16 %v288
        %v569 = vunpack.c.l.b16 %v289
        %v570 = vunpack.c.l.b16 %v290
        %v571 = vunpack.c.l.b16 %v291
        %v572 = vunpack.c.l.b16 %v292
        %v573 = vunpack.c.l.b16 %v293
        %v574 = vunpack.c.l.b16 %v294
        %v575 = vunpack.c.l.b16 %v295
        %v576 = vunpack.c.l.b16 %v296
        %v577 = vunpack.c.l.b16 %v297
        %v578 = vunpack.c.l.b16 %v298
        %v579 = vunpack.c.l.b16 %v299
        %v580 = vunpack.c.l.b16 %v300
        %v581 = vunpack.c.l.b16 %v301
        %v582 = vunpack.c.l.b16 %v302
        %v583 = vunpack.c.l.b16 %v303
        %v584 = vunpack.c.l.b16 %v304
        %v585 = vunpack.c.l.b16 %v305
        %v586 = vunpack.c.l.b16 %v306
        %v587 = vunpack.c.l.b16 %v307
        %v588 = vunpack.c.l.b16 %v308
        %v589 = vunpack.c.l.b16 %v309
        %v590 = vunpack.c.l.b16 %v310
        %v591 = vunpack.c.l.b16 %v311
        %v592 = vunpack.c.l.b16 %v312
        %v593 = vunpack.c.l.b16 %v313
        %v594 = vunpack.c.l.b16 %v314
        %v595 = vunpack.c.l.b16 %v315
        %v596 = vunpack.c.l.b16 %v316
        %v597 = vunpack.c.l.b16 %v317
        %v598 = vunpack.c.l.b16 %v318
        %v599 = vunpack.c.l.b16 %v319
        %v600 = vunpack.c.l.b16 %v320
        %v601 = vunpack.c.l.b16 %v321
        %v602 = vunpack.c.l.b16 %v322
        %v603 = vunpack.c.l.b16 %v323
        %v604 = vunpack.c.l.b16 %v324
        %v605 = vunpack.c.l.b16 %v325
        %v606 = vunpack.c.l.b16 %v326
        %v607 = vunpack.c.l.b16 %v327
        %v608 = vunpack.c.l.b16 %v328
        %v609 = vunpack.c.l.b16 %v329
        %v610 = vunpack.c.l.b16 %v330
        %v611 = vunpack.c.l.b16 %v331
        %v612 = vunpack.c.l.b16 %v332
        %v613 = vunpack.c.l.b16 %v333
        %v614 = vunpack.c.l.b16 %v334
        %v615 = vunpack.c.l.b16 %v335
        %v616 = vunpack.c.l.b16 %v336
        %v617 = vunpack.c.l.b16 %v337
        %v618 = vunpack.c.l.b16 %v338
        %v619 = vunpack.c.l.b16 %v339
        %v620 = vunpack.c.l.b16 %v340
        %v621 = vunpack.c.l.b16 %v341
        %v622 = vunpack.c.l.b16 %v342
        %v623 = vunpack.c.l.b16 %v343
        %v624 = vpack.c.b16 %v545, %v544
        %v625 = vpack.c.b16 %v547, %v546
        %v626 = vpack.c.b16 %v549, %v548
        %v627 = vpack.c.b16 %v551, %v550
        %v628 = vpack.c.b16 %v553, %v552
        %v629 = vpack.c.b16 %v555, %v554
        %v630 = vpack.c.b16 %v557, %v556
        %v631 = vpack.c.b16 %v559, %v558
        %v632 = vpack.c.b16 %v561, %v560
        %v633 = vpack.c.b16 %v563, %v562
        %v634 = vpack.c.b16 %v565, %v564
        %v635 = vpack.c.b16 %v567, %v566
        %v636 = vpack.c.b16 %v569, %v568
        %v637 = vpack.c.b16 %v571, %v570
        %v638 = vpack.c.b16 %v573, %v572
        %v639 = vpack.c.b16 %v575, %v574
        %v640 = vpack.c.b16 %v577, %v576
        %v641 = vpack.c.b16 %v579, %v578
        %v642 = vpack.c.b16 %v581, %v580
        %v643 = vpack.c.b16 %v583, %v582
        %v644 = vpack.c.b16 %v585, %v584
        %v645 = vpack.c.b16 %v587, %v586
        %v646 = vpack.c.b16 %v589, %v588
        %v647 = vpack.c.b16 %v591, %v590
        %v648 = vpack.c.b16 %v593, %v592
        %v649 = vpack.c.b16 %v595, %v594
        %v650 = vpack.c.b16 %v597, %v596
        %v651 = vpack.c.b16 %v599, %v598
        %v652 = vpack.c.b16 %v601, %v600
        %v653 = vpack.c.b16 %v603, %v602
        %v654 = vpack.c.b16 %v605, %v604
        %v655 = vpack.c.b16 %v607, %v606
        %v656 = vpack.c.b16 %v609, %v608
        %v657 = vpack.c.b16 %v611, %v610
        %v658 = vpack.c.b16 %v613, %v612
        %v659 = vpack.c.b16 %v615, %v614
        %v660 = vpack.c.b16 %v617, %v616
        %v661 = vpack.c.b16 %v619, %v618
        %v662 = vpack.c.b16 %v621, %v620
        %v663 = vpack.c.b16 %v623, %v622
        %704 = vmatprep.subr.bf16.mxu0 0
        %705 = vmatpush1.bf16.msra.mxu0 %v624
        %706 = vmatprep.subr.bf16.mxu0 0
        %707 = vmatpush1.bf16.msra.mxu0 %v625
        %708 = vmatprep.subr.bf16.mxu0 0
        %709 = vmatpush1.bf16.msra.mxu0 %v626
        %710 = vmatprep.subr.bf16.mxu0 0
        %711 = vmatpush1.bf16.msra.mxu0 %v627
        %712 = vmatprep.subr.bf16.mxu0 0
        %713 = vmatpush1.bf16.msra.mxu0 %v628
        %714 = vmatprep.subr.bf16.mxu0 0
        %715 = vmatpush1.bf16.msra.mxu0 %v629
        %716 = vmatprep.subr.bf16.mxu0 0
        %717 = vmatpush1.bf16.msra.mxu0 %v630
        %718 = vmatprep.subr.bf16.mxu0 0
        %719 = vmatpush1.bf16.msra.mxu0 %v631
        %720 = vmatprep.subr.bf16.mxu0 0
        %721 = vmatpush1.bf16.msra.mxu0 %v632
        %722 = vmatprep.subr.bf16.mxu0 0
        %723 = vmatpush1.bf16.msra.mxu0 %v633
        %724 = vmatprep.subr.bf16.mxu0 0
        %725 = vmatpush1.bf16.msra.mxu0 %v634
        %726 = vmatprep.subr.bf16.mxu0 0
        %727 = vmatpush1.bf16.msra.mxu0 %v635
        %728 = vmatprep.subr.bf16.mxu0 0
        %729 = vmatpush1.bf16.msra.mxu0 %v636
        %730 = vmatprep.subr.bf16.mxu0 0
        %731 = vmatpush1.bf16.msra.mxu0 %v637
        %732 = vmatprep.subr.bf16.mxu0 0
        %733 = vmatpush1.bf16.msra.mxu0 %v638
        %734 = vmatprep.subr.bf16.mxu0 0
        %735 = vmatpush1.bf16.msra.mxu0 %v639
        %736 = vmatprep.mubr.bf16.mxu0 %v425
        %737 = vmatmul.mubr.bf16.gmra.mrb[0].mxu0 %v424
        %v738 = vpop.f32.mrb[0].mxu0
        %v739 = vadd.f32 %v352, %v738
        %v740 = vpop.f32.mrb[0].mxu0
        %v741 = vpop.f32.mrb[0].mxu0
        %v742 = vadd.f32 %v353, %v741
        %v743 = vpop.f32.mrb[0].mxu0
        %744 = vmatprep.mubr.bf16.mxu0 %v430
        %745 = vmatmul.mubr.bf16.gmra.mrb[0].mxu0 %v429
        %v746 = vpop.f32.mrb[0].mxu0
        %v747 = vadd.f32 %v354, %v746
        %v748 = vpop.f32.mrb[0].mxu0
        %v749 = vpop.f32.mrb[0].mxu0
        %v750 = vadd.f32 %v355, %v749
        %v751 = vpop.f32.mrb[0].mxu0
        %752 = vmatprep.mubr.bf16.mxu0 %v435
        %753 = vmatmul.mubr.bf16.gmra.mrb[0].mxu0 %v434
        %v754 = vpop.f32.mrb[0].mxu0
        %v755 = vadd.f32 %v356, %v754
        %v756 = vpop.f32.mrb[0].mxu0
        %v757 = vpop.f32.mrb[0].mxu0
        %v758 = vadd.f32 %v357, %v757
        %v759 = vpop.f32.mrb[0].mxu0
        %760 = vmatprep.mubr.bf16.mxu0 %v440
        %761 = vmatmul.mubr.bf16.gmra.mrb[0].mxu0 %v439
        %v762 = vpop.f32.mrb[0].mxu0
        %v763 = vadd.f32 %v358, %v762
        %v764 = vpop.f32.mrb[0].mxu0
        %v765 = vpop.f32.mrb[0].mxu0
        %v766 = vadd.f32 %v359, %v765
        %v767 = vpop.f32.mrb[0].mxu0
        %768 = vdwg.mxu0
        %769 = vmatprep.subr.bf16.mxu0 0
        %770 = vmatpush1.bf16.msra.mxu0 %v640
        %771 = vmatprep.subr.bf16.mxu0 0
        %772 = vmatpush1.bf16.msra.mxu0 %v641
        %773 = vmatprep.subr.bf16.mxu0 0
        %774 = vmatpush1.bf16.msra.mxu0 %v642
        %775 = vmatprep.subr.bf16.mxu0 0
        %776 = vmatpush1.bf16.msra.mxu0 %v643
        %777 = vmatprep.subr.bf16.mxu0 0
        %778 = vmatpush1.bf16.msra.mxu0 %v644
        %779 = vmatprep.subr.bf16.mxu0 0
        %780 = vmatpush1.bf16.msra.mxu0 %v645
        %781 = vmatprep.subr.bf16.mxu0 0
        %782 = vmatpush1.bf16.msra.mxu0 %v646
        %783 = vmatprep.subr.bf16.mxu0 0
        %784 = vmatpush1.bf16.msra.mxu0 %v647
        %785 = vmatprep.subr.bf16.mxu0 0
        %786 = vmatpush1.bf16.msra.mxu0 %v648
        %787 = vmatprep.subr.bf16.mxu0 0
        %788 = vmatpush1.bf16.msra.mxu0 %v649
        %789 = vmatprep.subr.bf16.mxu0 0
        %790 = vmatpush1.bf16.msra.mxu0 %v650
        %791 = vmatprep.subr.bf16.mxu0 0
        %792 = vmatpush1.bf16.msra.mxu0 %v651
        %793 = vmatprep.subr.bf16.mxu0 0
        %794 = vmatpush1.bf16.msra.mxu0 %v652
        %795 = vmatprep.subr.bf16.mxu0 0
        %796 = vmatpush1.bf16.msra.mxu0 %v653
        %797 = vmatprep.subr.bf16.mxu0 0
        %798 = vmatpush1.bf16.msra.mxu0 %v654
        %799 = vmatprep.subr.bf16.mxu0 0
        %800 = vmatpush1.bf16.msra.mxu0 %v655
        %801 = vmatprep.mubr.bf16.mxu0 %v427
        %802 = vmatmul.mubr.bf16.gmra.mrb[0].mxu0 %v426
        %v803 = vpop.f32.mrb[0].mxu0
        %v804 = vadd.f32 %v739, %v803
        %v805 = vpop.f32.mrb[0].mxu0
        %v806 = vpop.f32.mrb[0].mxu0
        %v807 = vadd.f32 %v742, %v806
        %v808 = vpop.f32.mrb[0].mxu0
        %809 = vmatprep.mubr.bf16.mxu0 %v432
        %810 = vmatmul.mubr.bf16.gmra.mrb[0].mxu0 %v431
        %v811 = vpop.f32.mrb[0].mxu0
        %v812 = vadd.f32 %v747, %v811
        %v813 = vpop.f32.mrb[0].mxu0
        %v814 = vpop.f32.mrb[0].mxu0
        %v815 = vadd.f32 %v750, %v814
        %v816 = vpop.f32.mrb[0].mxu0
        %817 = vmatprep.mubr.bf16.mxu0 %v437
        %818 = vmatmul.mubr.bf16.gmra.mrb[0].mxu0 %v436
        %v819 = vpop.f32.mrb[0].mxu0
        %v820 = vadd.f32 %v755, %v819
        %v821 = vpop.f32.mrb[0].mxu0
        %v822 = vpop.f32.mrb[0].mxu0
        %v823 = vadd.f32 %v758, %v822
        %v824 = vpop.f32.mrb[0].mxu0
        %825 = vmatprep.mubr.bf16.mxu0 %v442
        %826 = vmatmul.mubr.bf16.gmra.mrb[0].mxu0 %v441
        %v827 = vpop.f32.mrb[0].mxu0
        %v828 = vadd.f32 %v763, %v827
        %v829 = vpop.f32.mrb[0].mxu0
        %v830 = vpop.f32.mrb[0].mxu0
        %v831 = vadd.f32 %v766, %v830
        %v832 = vpop.f32.mrb[0].mxu0
        %833 = vdwg.mxu0
        %834 = vmatprep.subr.bf16.mxu0 0
        %835 = vmatpush1.bf16.msra.mxu0 %v656
        %836 = vmatprep.subr.bf16.mxu0 0
        %837 = vmatpush1.bf16.msra.mxu0 %v657
        %838 = vmatprep.subr.bf16.mxu0 0
        %839 = vmatpush1.bf16.msra.mxu0 %v658
        %840 = vmatprep.subr.bf16.mxu0 0
        %841 = vmatpush1.bf16.msra.mxu0 %v659
        %842 = vmatprep.subr.bf16.mxu0 0
        %843 = vmatpush1.bf16.msra.mxu0 %v660
        %844 = vmatprep.subr.bf16.mxu0 0
        %845 = vmatpush1.bf16.msra.mxu0 %v661
        %846 = vmatprep.subr.bf16.mxu0 0
        %847 = vmatpush1.bf16.msra.mxu0 %v662
        %848 = vmatprep.subr.bf16.mxu0 0
        %849 = vmatpush1.bf16.msra.mxu0 %v663
        %850 = vmatprep.subr.bf16.mxu0 0
        %851 = vmatpush1.bf16.msra.mxu0 0
        %852 = vmatprep.subr.bf16.mxu0 0
        %853 = vmatpush1.bf16.msra.mxu0 0
        %854 = vmatprep.subr.bf16.mxu0 0
        %855 = vmatpush1.bf16.msra.mxu0 0
        %856 = vmatprep.subr.bf16.mxu0 0
        %857 = vmatpush1.bf16.msra.mxu0 0
        %858 = vmatprep.subr.bf16.mxu0 0
        %859 = vmatpush1.bf16.msra.mxu0 0
        %860 = vmatprep.subr.bf16.mxu0 0
        %861 = vmatpush1.bf16.msra.mxu0 0
        %862 = vmatprep.subr.bf16.mxu0 0
        %863 = vmatpush1.bf16.msra.mxu0 0
        %864 = vmatprep.subr.bf16.mxu0 0
        %865 = vmatpush1.bf16.msra.mxu0 0
        %866 = vmatprep.mubr.bf16.mxu0 0
        %867 = vmatmul.mubr.bf16.gmra.mrb[0].mxu0 %v428
        %v868 = vpop.f32.mrb[0].mxu0
        %v869 = vadd.f32 %v804, %v868
        %v870 = vpop.f32.mrb[0].mxu0
        %v871 = vpop.f32.mrb[0].mxu0
        %v872 = vadd.f32 %v807, %v871
        %v873 = vpop.f32.mrb[0].mxu0
        %874 = vmatprep.mubr.bf16.mxu0 0
        %875 = vmatmul.mubr.bf16.gmra.mrb[0].mxu0 %v433
        %v876 = vpop.f32.mrb[0].mxu0
        %v877 = vadd.f32 %v812, %v876
        %v878 = vpop.f32.mrb[0].mxu0
        %v879 = vpop.f32.mrb[0].mxu0
        %v880 = vadd.f32 %v815, %v879
        %v881 = vpop.f32.mrb[0].mxu0
        %882 = vmatprep.mubr.bf16.mxu0 0
        %883 = vmatmul.mubr.bf16.gmra.mrb[0].mxu0 %v438
        %v884 = vpop.f32.mrb[0].mxu0
        %v885 = vadd.f32 %v820, %v884
        %v886 = vpop.f32.mrb[0].mxu0
        %v887 = vpop.f32.mrb[0].mxu0
        %v888 = vadd.f32 %v823, %v887
        %v889 = vpop.f32.mrb[0].mxu0
        %890 = vmatprep.mubr.bf16.mxu0 0
        %891 = vmatmul.mubr.bf16.gmra.mrb[0].mxu0 %v443
        %v892 = vpop.f32.mrb[0].mxu0
        %v893 = vadd.f32 %v828, %v892
        %v894 = vpop.f32.mrb[0].mxu0
        %v895 = vpop.f32.mrb[0].mxu0
        %v896 = vadd.f32 %v831, %v895
        %v897 = vpop.f32.mrb[0].mxu0
        %898 = vdwg.mxu0
        %899 = vst [vmem:[%s217] sm:$0xff] %v869
        %900 = vst [vmem:[%s217 + $0x8] sm:$0xff] %v872
        %901 = vst [vmem:[%s217 + $0x10] sm:$0xff] %v877
        %902 = vst [vmem:[%s217 + $0x18] sm:$0xff] %v880
        %903 = vst [vmem:[%s217 + $0x20] sm:$0xff] %v885
        %904 = vst [vmem:[%s217 + $0x28] sm:$0xff] %v888
        %905 = vst [vmem:[%s217 + $0x30] sm:$0xff] %v893
        %906 = vst [vmem:[%s217 + $0x38] sm:$0xff] %v896
        %s907 = sand.u32 %s119, 1
        %s908 = scalar_lea.sflag [#allocation3], %s907
        %s909 = sand.u32 %s119, 1
        %s910 = smul.addr %s909, 64
        %s911 = scalar_lea.vmem [#allocation2], %s910
        // Predicated region
        $region33: #{resblock_forward.7} parent=31 // pred_check
          %p912 = pneg %p129
        $region34: #{resblock_forward.7} parent=31 // pred_check_branch
          %914 = sbr.rel (%p912) target = $region36
        $region35: #{resblock_forward.7} parent=31 // pred_region
          %s915 = smul.u32 8, %s21
          %s917 = ssub.s32 1024, 1024
          %918 = vsyncadd %s908, %s917
          %s919 = sadd.s32 %s22, %s915
          %s920 = smul.addr %s919, 128
          %s921 = scalar_lea.hbm %s3, %s920
          %s922 = sshll.u32 %s911, 4
          %s923 = int_to_ptr.vmem [resolvable:$true] %s922
          %928 = dma.vmem_to_hbm [thread:$0]  %s923, 1024, %s921, %s908, 128, 128, 8
        $region36: #{resblock_forward.7} parent=31 // pred_fallthru
          _
      $region32: #{resblock_forward.7} parent=5 // pred_fallthru
        _
      %p929 = scmp.le.s32.totalorder 2, %s12
      // Predicated region
      $region37: #{resblock_forward.7} parent=5 // pred_check
        %p930 = pneg %p929
      $region38: #{resblock_forward.7} parent=5 // pred_check_branch
        %932 = sbr.rel (%p930) target = $region40
      $region39: #{resblock_forward.7} parent=5 // pred_region
        %s933 = ssub.s32 %s12, 2
        // Predicated region
        $region41: #{resblock_forward.7} parent=39 // pred_check
          %p934 = pneg %p135
        $region42: #{resblock_forward.7} parent=39 // pred_check_branch
          %936 = sbr.rel (%p934) target = $region44
        $region43: #{resblock_forward.7} parent=39 // pred_region
          %s937 = sand.u32 %s120, 1
          %s938 = scalar_lea.sflag [#allocation3], %s937
          %s939 = sand.u32 %s120, 1
          %s940 = smul.addr %s939, 64
          %s941 = scalar_lea.vmem [#allocation2], %s940
          %942 = dma.done %s938, 1024
        $region44: #{resblock_forward.7} parent=39 // pred_fallthru
          _
      $region40: #{resblock_forward.7} parent=5 // pred_fallthru
        _
    $region6: #{resblock_forward.7} parent=1 // loop_footer
      %s16 = sadd.s32 1, %s12
    $region7: #{resblock_forward.7} parent=1 // loop_footer_branch
      %11 = sbr.rel target = $region3
    $region8: #{resblock_forward.7} parent=1 // loop_exit
      _
    %943 = vsyncpa [#allocation3], 1
    %s944 = scalar_lea.sflag [#allocation3], 1
    %945 = vsyncpa %s944, 1

</llo_original>
